<compile_context>
chip_gen: v7x
topology: tpu7x:2x2x1
jax: 0.10.0
libtpu: 0.0.40
codegen_flags: <defaults>
</compile_context>

<pallas_src>
import math
import functools

import jax
import jax.numpy as jnp
from jax.experimental import pallas as pl
from jax.experimental.pallas import tpu as pltpu


def _mha_kernel(x_ref, y_ref, wqk_ref, bqk_ref, wv_ref, bv_ref, wo_ref, bo_ref,
                out_ref, scores_ref, *, n_heads, dim_k, dim_v, use_bf16_mxu):
    BT, L, D = x_ref.shape
    H, dk, dv = n_heads, dim_k, dim_v
    mm_dt = jnp.bfloat16 if use_bf16_mxu else jnp.float32

    # ---- Fused Q|K projection and V projection: two un-replicated 2-D MXU matmuls.
    # (BT, L, D) -> (BT*L, D) is a leading-dim merge (no relayout).
    x2 = x_ref[...].reshape(BT * L, D)
    y2 = y_ref[...].reshape(BT * L, D)
    qk = jnp.dot(x2.astype(mm_dt), wqk_ref[...].astype(mm_dt),
                 preferred_element_type=jnp.float32) + bqk_ref[...]     # (BT*L, 2*H*dk)
    vp = jnp.dot(y2.astype(mm_dt), wv_ref[...].astype(mm_dt),
                 preferred_element_type=jnp.float32) + bv_ref[...]      # (BT*L, H*dv)

    # ---- Attention core: static unroll over the (small) head count.  The per-head
    # slices are static lane slices; each head is the intrinsic block-diagonal piece of
    # MHA, so H small batched matmuls cost less than the relayouts a fully batched
    # (BT*H)-einsum formulation would need.  1/sqrt(d_model) is already folded into Wq.
    p_heads, ctx_heads = [], []
    for h in range(H):
        q_h = qk[:, h * dk:(h + 1) * dk].reshape(BT, L, dk)
        k_h = qk[:, H * dk + h * dk:H * dk + (h + 1) * dk].reshape(BT, L, dk)
        v_h = vp[:, h * dv:(h + 1) * dv].reshape(BT, L, dv)

        s = jnp.einsum('ble,bse->bls', q_h.astype(mm_dt), k_h.astype(mm_dt),
                       preferred_element_type=jnp.float32)              # (BT, L, L)
        # Fused softmax in f32 (v5e has no bf16 VPU/EUP); one live (BT, L, L) tensor.
        s = s - jnp.max(s, axis=-1, keepdims=True)
        p = jnp.exp(s)
        p = p * pl.reciprocal(jnp.sum(p, axis=-1, keepdims=True), approx=False)
        p_heads.append(p)

        ctx_heads.append(
            jnp.einsum('bls,bsd->bld', p.astype(mm_dt), v_h.astype(mm_dt),
                       preferred_element_type=jnp.float32))             # (BT, L, dv)

    # One lane-dense store of all heads' probabilities: (BT, L, H*L) slab.
    scores_ref[...] = jnp.concatenate(p_heads, axis=-1)

    # ---- Output projection: one 2-D matmul of concat(heads) with Wo.
    ctx = jnp.concatenate(ctx_heads, axis=-1).reshape(BT * L, H * dv)   # h-major lanes
    o = jnp.dot(ctx.astype(mm_dt), wo_ref[...].astype(mm_dt),
                preferred_element_type=jnp.float32) + bo_ref[...]       # (BT*L, D)
    out_ref[...] = o.reshape(BT, L, D)


def multihead_attention(x, y, params, *, d_model, dim_k, dim_v, n_heads,
                        batch_tile=None, use_bf16_mxu=False,
                        vmem_limit_bytes=32 * 1024 * 1024):
    """x, y: (B, L, D) float32. Returns (out (B, L, D), scores (B, H, L, L))."""
    B, L, D = x.shape
    assert D == d_model
    H, dk, dv = n_heads, dim_k, dim_v
    norm_fact = 1.0 / math.sqrt(d_model)
    wq, bq, wk, bk, wv, bv, wo, bo = params

    # Host-side (outside the kernel) weight prep:
    #   * fold 1/sqrt(d_model) into the Q projection (scalar * weights, exact to rounding)
    #   * fuse the Q and K projections into a single (D, 2*H*dk) weight / (1, 2*H*dk) bias
    wqk = jnp.concatenate([wq * norm_fact, wk], axis=1)                  # (D, 2*H*dk)
    bqk = jnp.concatenate([bq * norm_fact, bk]).reshape(1, 2 * H * dk)   # (1, 2*H*dk)
    bv2 = bv.reshape(1, H * dv)                                          # (1, H*dv)
    bo2 = bo.reshape(1, d_model)                                         # (1, D)

    # Batch tiling: >= 2 grid steps whenever B >= 2 so the "parallel" axis can feed both
    # v7x TensorCores; otherwise keep tiles as large as possible (per-step pipeline
    # overhead ~0.35us).  Pass batch_tile=B to force a single step for tiny workloads.
    if batch_tile is None:
        BT = B // 2 if (B % 2 == 0 and B >= 2) else (1 if B > 1 else B)
    else:
        BT = batch_tile
    assert B % BT == 0, "batch must be divisible by the batch tile"
    grid = (B // BT,)

    kernel = functools.partial(_mha_kernel, n_heads=H, dim_k=dk, dim_v=dv,
                               use_bf16_mxu=use_bf16_mxu)
    full2 = lambda r, c: pl.BlockSpec((r, c), lambda b: (0, 0))

    out, scores_slab = pl.pallas_call(
        kernel,
        out_shape=(
            jax.ShapeDtypeStruct((B, L, d_model), jnp.float32),      # out
            jax.ShapeDtypeStruct((B, L, H * L), jnp.float32),        # scores slab
        ),
        grid=grid,
        in_specs=[
            pl.BlockSpec((BT, L, d_model), lambda b: (b, 0, 0)),     # x
            pl.BlockSpec((BT, L, d_model), lambda b: (b, 0, 0)),     # y
            full2(d_model, 2 * H * dk),                              # Wq*nf | Wk
            full2(1, 2 * H * dk),                                    # bq*nf | bk
            full2(d_model, H * dv),                                  # Wv
            full2(1, H * dv),                                        # bv
            full2(H * dv, d_model),                                  # Wo
            full2(1, d_model),                                       # bo
        ],
        out_specs=(
            pl.BlockSpec((BT, L, d_model), lambda b: (b, 0, 0)),     # out
            pl.BlockSpec((BT, L, H * L), lambda b: (b, 0, 0)),       # scores slab
        ),
        compiler_params=pltpu.CompilerParams(
            dimension_semantics=("parallel",),
            vmem_limit_bytes=vmem_limit_bytes),
    )(x, y, wqk, bqk, wv, bv2, wo, bo2)

    # Wrapper-side layout plumbing back to the module's (B, H, L, L) convention.
    scores = scores_slab.reshape(B, L, H, L).transpose(0, 2, 1, 3)
    return out, scores


def _reference(x, y, params, *, d_model, dim_k, dim_v, n_heads):
    """Pure-JAX reference matching the PyTorch forward."""
    wq, bq, wk, bk, wv, bv, wo, bo = params
    B, L, _ = x.shape
    Q = (x @ wq + bq).reshape(B, L, n_heads, dim_k)
    K = (x @ wk + bk).reshape(B, L, n_heads, dim_k)
    V = (y @ wv + bv).reshape(B, L, n_heads, dim_v)
    scores = jnp.einsum('blhe,bshe->bhls', Q, K) * (1.0 / math.sqrt(d_model))
    scores = jax.nn.softmax(scores, axis=-1)
    out = jnp.einsum('bhls,bshd->blhd', scores, V).reshape(B, L, -1)
    return out @ wo + bo, scores


if __name__ == "__main__":
    # Small shapes consistent with the module
    B, L, d_model = 2, 8, 32
    n_heads, dim_k, dim_v = 4, 8, 8

    key = jax.random.PRNGKey(0)
    ks = jax.random.split(key, 10)

    # Deterministic synthetic parameters (nn.Linear shapes, stored transposed: (in, out))
    def init_linear(kw, kb, fan_in, fan_out):
        bound = 1.0 / math.sqrt(fan_in)
        w = jax.random.uniform(kw, (fan_in, fan_out), jnp.float32, -bound, bound)
        b = jax.random.uniform(kb, (fan_out,), jnp.float32, -bound, bound)
        return w, b

    wq, bq = init_linear(ks[0], ks[1], d_model, dim_k * n_heads)
    wk, bk = init_linear(ks[2], ks[3], d_model, dim_k * n_heads)
    wv, bv = init_linear(ks[4], ks[5], d_model, dim_v * n_heads)
    wo, bo = init_linear(ks[6], ks[7], dim_v * n_heads, d_model)
    params = (wq, bq, wk, bk, wv, bv, wo, bo)

    x = jax.random.normal(ks[8], (B, L, d_model), jnp.float32)
    y = jax.random.normal(ks[9], (B, L, d_model), jnp.float32)

    out, scores = multihead_attention(x, y, params, d_model=d_model,
                                      dim_k=dim_k, dim_v=dim_v, n_heads=n_heads)
    jax.block_until_ready((out, scores))

    ref_out, ref_scores = _reference(x, y, params, d_model=d_model,
                                     dim_k=dim_k, dim_v=dim_v, n_heads=n_heads)
    assert out.shape == (B, L, d_model) and scores.shape == (B, n_heads, L, L)
    assert jnp.allclose(out, ref_out, atol=1e-4, rtol=1e-4)
    assert jnp.allclose(scores, ref_scores, atol=1e-5, rtol=1e-5)

    print("KERNEL_OK")
</pallas_src>

<mosaic_0001>
module attributes {stable_mosaic.version = 11 : i64} {
  func.func @_mha_kernel(%arg0: i32, %arg1: memref<1x8x32xf32, #tpu.memory_space<vmem>>, %arg2: memref<1x8x32xf32, #tpu.memory_space<vmem>>, %arg3: memref<32x64xf32, #tpu.memory_space<vmem>>, %arg4: memref<1x64xf32, #tpu.memory_space<vmem>>, %arg5: memref<32x32xf32, #tpu.memory_space<vmem>>, %arg6: memref<1x32xf32, #tpu.memory_space<vmem>>, %arg7: memref<32x32xf32, #tpu.memory_space<vmem>>, %arg8: memref<1x32xf32, #tpu.memory_space<vmem>>, %arg9: memref<1x8x32xf32, #tpu.memory_space<vmem>>, %arg10: memref<1x8x32xf32, #tpu.memory_space<vmem>>) attributes {dimension_semantics = [#tpu.dimension_semantics<parallel>], iteration_bounds = array<i64: 2>, scalar_prefetch = 0 : i64, scratch_operands = 0 : i64, tpu.core_type = #tpu.core_type<tc>, window_params = [{transform_indices = @transform_0, window_bounds = array<i64: 1, 8, 32>}, {transform_indices = @transform_1, window_bounds = array<i64: 1, 8, 32>}, {pipeline_mode = #tpu.pipeline_mode<synchronous>, transform_indices = @transform_2, window_bounds = array<i64: 32, 64>}, {pipeline_mode = #tpu.pipeline_mode<synchronous>, transform_indices = @transform_3, window_bounds = array<i64: 1, 64>}, {pipeline_mode = #tpu.pipeline_mode<synchronous>, transform_indices = @transform_4, window_bounds = array<i64: 32, 32>}, {pipeline_mode = #tpu.pipeline_mode<synchronous>, transform_indices = @transform_5, window_bounds = array<i64: 1, 32>}, {pipeline_mode = #tpu.pipeline_mode<synchronous>, transform_indices = @transform_6, window_bounds = array<i64: 32, 32>}, {pipeline_mode = #tpu.pipeline_mode<synchronous>, transform_indices = @transform_7, window_bounds = array<i64: 1, 32>}, {transform_indices = @transform_8, window_bounds = array<i64: 1, 8, 32>}, {transform_indices = @transform_9, window_bounds = array<i64: 1, 8, 32>}]} {
    %c0 = arith.constant 0 : index
    %c0_0 = arith.constant 0 : index
    %c0_1 = arith.constant 0 : index
    %0 = vector.load %arg1[%c0, %c0_0, %c0_1] : memref<1x8x32xf32, #tpu.memory_space<vmem>>, vector<1x8x32xf32>
    %1 = vector.shape_cast %0 : vector<1x8x32xf32> to vector<8x32xf32>
    %c0_2 = arith.constant 0 : index
    %c0_3 = arith.constant 0 : index
    %c0_4 = arith.constant 0 : index
    %2 = vector.load %arg2[%c0_2, %c0_3, %c0_4] : memref<1x8x32xf32, #tpu.memory_space<vmem>>, vector<1x8x32xf32>
    %3 = vector.shape_cast %2 : vector<1x8x32xf32> to vector<8x32xf32>
    %c0_5 = arith.constant 0 : index
    %c0_6 = arith.constant 0 : index
    %4 = vector.load %arg3[%c0_5, %c0_6] : memref<32x64xf32, #tpu.memory_space<vmem>>, vector<32x64xf32>
    %cst = arith.constant dense<0.000000e+00> : vector<8x64xf32>
    %5 = tpu.matmul %1, %4, %cst {dimension_numbers = #tpu.dot_dimension_numbers<[1], [0], [0], [1], [0, 0, 1, 1], [], []>} : vector<8x32xf32>, vector<32x64xf32>, vector<8x64xf32> -> vector<8x64xf32>
    %c0_7 = arith.constant 0 : index
    %c0_8 = arith.constant 0 : index
    %6 = vector.load %arg4[%c0_7, %c0_8] : memref<1x64xf32, #tpu.memory_space<vmem>>, vector<1x64xf32>
    %7 = vector.broadcast %6 : vector<1x64xf32> to vector<8x64xf32>
    %8 = arith.addf %5, %7 : vector<8x64xf32>
    %c0_9 = arith.constant 0 : index
    %c0_10 = arith.constant 0 : index
    %9 = vector.load %arg5[%c0_9, %c0_10] : memref<32x32xf32, #tpu.memory_space<vmem>>, vector<32x32xf32>
    %cst_11 = arith.constant dense<0.000000e+00> : vector<8x32xf32>
    %10 = tpu.matmul %3, %9, %cst_11 {dimension_numbers = #tpu.dot_dimension_numbers<[1], [0], [0], [1], [0, 0, 1, 1], [], []>} : vector<8x32xf32>, vector<32x32xf32>, vector<8x32xf32> -> vector<8x32xf32>
    %c0_12 = arith.constant 0 : index
    %c0_13 = arith.constant 0 : index
    %11 = vector.load %arg6[%c0_12, %c0_13] : memref<1x32xf32, #tpu.memory_space<vmem>>, vector<1x32xf32>
    %12 = vector.broadcast %11 : vector<1x32xf32> to vector<8x32xf32>
    %13 = arith.addf %10, %12 : vector<8x32xf32>
    %14 = vector.extract_strided_slice %8 {offsets = [0, 0], sizes = [8, 8], strides = [1, 1]} : vector<8x64xf32> to vector<8x8xf32>
    %15 = vector.shape_cast %14 : vector<8x8xf32> to vector<1x8x8xf32>
    %16 = vector.extract_strided_slice %8 {offsets = [0, 32], sizes = [8, 8], strides = [1, 1]} : vector<8x64xf32> to vector<8x8xf32>
    %17 = vector.shape_cast %16 : vector<8x8xf32> to vector<1x8x8xf32>
    %18 = vector.extract_strided_slice %13 {offsets = [0, 0], sizes = [8, 8], strides = [1, 1]} : vector<8x32xf32> to vector<8x8xf32>
    %19 = vector.shape_cast %18 : vector<8x8xf32> to vector<1x8x8xf32>
    "tpu.trace_start"() <{level = 10 : i32, message = "ble,bse->bls"}> : () -> ()
    %cst_14 = arith.constant dense<0.000000e+00> : vector<1x8x8xf32>
    %20 = tpu.matmul %15, %17, %cst_14 {dimension_numbers = #tpu.dot_dimension_numbers<[2], [2], [1], [1], [0, 0, 0, 1, 1, 1], [0], [0]>} : vector<1x8x8xf32>, vector<1x8x8xf32>, vector<1x8x8xf32> -> vector<1x8x8xf32>
    "tpu.trace_stop"() : () -> ()
    %cst_15 = arith.constant dense<0xFF800000> : vector<1x8xf32>
    %21 = vector.multi_reduction <maximumf>, %20, %cst_15 [2] : vector<1x8x8xf32> to vector<1x8xf32>
    %22 = vector.shape_cast %21 : vector<1x8xf32> to vector<1x8x1xf32>
    %23 = vector.broadcast %22 : vector<1x8x1xf32> to vector<1x8x8xf32>
    %24 = arith.subf %20, %23 : vector<1x8x8xf32>
    %25 = math.exp %24 : vector<1x8x8xf32>
    %cst_16 = arith.constant dense<0.000000e+00> : vector<1x8xf32>
    %26 = vector.multi_reduction <add>, %25, %cst_16 [2] : vector<1x8x8xf32> to vector<1x8xf32>
    %27 = vector.shape_cast %26 : vector<1x8xf32> to vector<1x8x1xf32>
    %28 = tpu.reciprocal %27 : vector<1x8x1xf32> -> vector<1x8x1xf32>
    %29 = vector.broadcast %28 : vector<1x8x1xf32> to vector<1x8x8xf32>
    %30 = arith.mulf %25, %29 : vector<1x8x8xf32>
    "tpu.trace_start"() <{level = 10 : i32, message = "bls,bsd->bld"}> : () -> ()
    %cst_17 = arith.constant dense<0.000000e+00> : vector<1x8x8xf32>
    %31 = tpu.matmul %30, %19, %cst_17 {dimension_numbers = #tpu.dot_dimension_numbers<[2], [1], [1], [2], [0, 0, 0, 1, 1, 2], [0], [0]>} : vector<1x8x8xf32>, vector<1x8x8xf32>, vector<1x8x8xf32> -> vector<1x8x8xf32>
    "tpu.trace_stop"() : () -> ()
    %32 = vector.extract_strided_slice %8 {offsets = [0, 8], sizes = [8, 8], strides = [1, 1]} : vector<8x64xf32> to vector<8x8xf32>
    %33 = vector.shape_cast %32 : vector<8x8xf32> to vector<1x8x8xf32>
    %34 = vector.extract_strided_slice %8 {offsets = [0, 40], sizes = [8, 8], strides = [1, 1]} : vector<8x64xf32> to vector<8x8xf32>
    %35 = vector.shape_cast %34 : vector<8x8xf32> to vector<1x8x8xf32>
    %36 = vector.extract_strided_slice %13 {offsets = [0, 8], sizes = [8, 8], strides = [1, 1]} : vector<8x32xf32> to vector<8x8xf32>
    %37 = vector.shape_cast %36 : vector<8x8xf32> to vector<1x8x8xf32>
    "tpu.trace_start"() <{level = 10 : i32, message = "ble,bse->bls"}> : () -> ()
    %cst_18 = arith.constant dense<0.000000e+00> : vector<1x8x8xf32>
    %38 = tpu.matmul %33, %35, %cst_18 {dimension_numbers = #tpu.dot_dimension_numbers<[2], [2], [1], [1], [0, 0, 0, 1, 1, 1], [0], [0]>} : vector<1x8x8xf32>, vector<1x8x8xf32>, vector<1x8x8xf32> -> vector<1x8x8xf32>
    "tpu.trace_stop"() : () -> ()
    %cst_19 = arith.constant dense<0xFF800000> : vector<1x8xf32>
    %39 = vector.multi_reduction <maximumf>, %38, %cst_19 [2] : vector<1x8x8xf32> to vector<1x8xf32>
    %40 = vector.shape_cast %39 : vector<1x8xf32> to vector<1x8x1xf32>
    %41 = vector.broadcast %40 : vector<1x8x1xf32> to vector<1x8x8xf32>
    %42 = arith.subf %38, %41 : vector<1x8x8xf32>
    %43 = math.exp %42 : vector<1x8x8xf32>
    %cst_20 = arith.constant dense<0.000000e+00> : vector<1x8xf32>
    %44 = vector.multi_reduction <add>, %43, %cst_20 [2] : vector<1x8x8xf32> to vector<1x8xf32>
    %45 = vector.shape_cast %44 : vector<1x8xf32> to vector<1x8x1xf32>
    %46 = tpu.reciprocal %45 : vector<1x8x1xf32> -> vector<1x8x1xf32>
    %47 = vector.broadcast %46 : vector<1x8x1xf32> to vector<1x8x8xf32>
    %48 = arith.mulf %43, %47 : vector<1x8x8xf32>
    "tpu.trace_start"() <{level = 10 : i32, message = "bls,bsd->bld"}> : () -> ()
    %cst_21 = arith.constant dense<0.000000e+00> : vector<1x8x8xf32>
    %49 = tpu.matmul %48, %37, %cst_21 {dimension_numbers = #tpu.dot_dimension_numbers<[2], [1], [1], [2], [0, 0, 0, 1, 1, 2], [0], [0]>} : vector<1x8x8xf32>, vector<1x8x8xf32>, vector<1x8x8xf32> -> vector<1x8x8xf32>
    "tpu.trace_stop"() : () -> ()
    %50 = vector.extract_strided_slice %8 {offsets = [0, 16], sizes = [8, 8], strides = [1, 1]} : vector<8x64xf32> to vector<8x8xf32>
    %51 = vector.shape_cast %50 : vector<8x8xf32> to vector<1x8x8xf32>
    %52 = vector.extract_strided_slice %8 {offsets = [0, 48], sizes = [8, 8], strides = [1, 1]} : vector<8x64xf32> to vector<8x8xf32>
    %53 = vector.shape_cast %52 : vector<8x8xf32> to vector<1x8x8xf32>
    %54 = vector.extract_strided_slice %13 {offsets = [0, 16], sizes = [8, 8], strides = [1, 1]} : vector<8x32xf32> to vector<8x8xf32>
    %55 = vector.shape_cast %54 : vector<8x8xf32> to vector<1x8x8xf32>
    "tpu.trace_start"() <{level = 10 : i32, message = "ble,bse->bls"}> : () -> ()
    %cst_22 = arith.constant dense<0.000000e+00> : vector<1x8x8xf32>
    %56 = tpu.matmul %51, %53, %cst_22 {dimension_numbers = #tpu.dot_dimension_numbers<[2], [2], [1], [1], [0, 0, 0, 1, 1, 1], [0], [0]>} : vector<1x8x8xf32>, vector<1x8x8xf32>, vector<1x8x8xf32> -> vector<1x8x8xf32>
    "tpu.trace_stop"() : () -> ()
    %cst_23 = arith.constant dense<0xFF800000> : vector<1x8xf32>
    %57 = vector.multi_reduction <maximumf>, %56, %cst_23 [2] : vector<1x8x8xf32> to vector<1x8xf32>
    %58 = vector.shape_cast %57 : vector<1x8xf32> to vector<1x8x1xf32>
    %59 = vector.broadcast %58 : vector<1x8x1xf32> to vector<1x8x8xf32>
    %60 = arith.subf %56, %59 : vector<1x8x8xf32>
    %61 = math.exp %60 : vector<1x8x8xf32>
    %cst_24 = arith.constant dense<0.000000e+00> : vector<1x8xf32>
    %62 = vector.multi_reduction <add>, %61, %cst_24 [2] : vector<1x8x8xf32> to vector<1x8xf32>
    %63 = vector.shape_cast %62 : vector<1x8xf32> to vector<1x8x1xf32>
    %64 = tpu.reciprocal %63 : vector<1x8x1xf32> -> vector<1x8x1xf32>
    %65 = vector.broadcast %64 : vector<1x8x1xf32> to vector<1x8x8xf32>
    %66 = arith.mulf %61, %65 : vector<1x8x8xf32>
    "tpu.trace_start"() <{level = 10 : i32, message = "bls,bsd->bld"}> : () -> ()
    %cst_25 = arith.constant dense<0.000000e+00> : vector<1x8x8xf32>
    %67 = tpu.matmul %66, %55, %cst_25 {dimension_numbers = #tpu.dot_dimension_numbers<[2], [1], [1], [2], [0, 0, 0, 1, 1, 2], [0], [0]>} : vector<1x8x8xf32>, vector<1x8x8xf32>, vector<1x8x8xf32> -> vector<1x8x8xf32>
    "tpu.trace_stop"() : () -> ()
    %68 = vector.extract_strided_slice %8 {offsets = [0, 24], sizes = [8, 8], strides = [1, 1]} : vector<8x64xf32> to vector<8x8xf32>
    %69 = vector.shape_cast %68 : vector<8x8xf32> to vector<1x8x8xf32>
    %70 = vector.extract_strided_slice %8 {offsets = [0, 56], sizes = [8, 8], strides = [1, 1]} : vector<8x64xf32> to vector<8x8xf32>
    %71 = vector.shape_cast %70 : vector<8x8xf32> to vector<1x8x8xf32>
    %72 = vector.extract_strided_slice %13 {offsets = [0, 24], sizes = [8, 8], strides = [1, 1]} : vector<8x32xf32> to vector<8x8xf32>
    %73 = vector.shape_cast %72 : vector<8x8xf32> to vector<1x8x8xf32>
    "tpu.trace_start"() <{level = 10 : i32, message = "ble,bse->bls"}> : () -> ()
    %cst_26 = arith.constant dense<0.000000e+00> : vector<1x8x8xf32>
    %74 = tpu.matmul %69, %71, %cst_26 {dimension_numbers = #tpu.dot_dimension_numbers<[2], [2], [1], [1], [0, 0, 0, 1, 1, 1], [0], [0]>} : vector<1x8x8xf32>, vector<1x8x8xf32>, vector<1x8x8xf32> -> vector<1x8x8xf32>
    "tpu.trace_stop"() : () -> ()
    %cst_27 = arith.constant dense<0xFF800000> : vector<1x8xf32>
    %75 = vector.multi_reduction <maximumf>, %74, %cst_27 [2] : vector<1x8x8xf32> to vector<1x8xf32>
    %76 = vector.shape_cast %75 : vector<1x8xf32> to vector<1x8x1xf32>
    %77 = vector.broadcast %76 : vector<1x8x1xf32> to vector<1x8x8xf32>
    %78 = arith.subf %74, %77 : vector<1x8x8xf32>
    %79 = math.exp %78 : vector<1x8x8xf32>
    %cst_28 = arith.constant dense<0.000000e+00> : vector<1x8xf32>
    %80 = vector.multi_reduction <add>, %79, %cst_28 [2] : vector<1x8x8xf32> to vector<1x8xf32>
    %81 = vector.shape_cast %80 : vector<1x8xf32> to vector<1x8x1xf32>
    %82 = tpu.reciprocal %81 : vector<1x8x1xf32> -> vector<1x8x1xf32>
    %83 = vector.broadcast %82 : vector<1x8x1xf32> to vector<1x8x8xf32>
    %84 = arith.mulf %79, %83 : vector<1x8x8xf32>
    "tpu.trace_start"() <{level = 10 : i32, message = "bls,bsd->bld"}> : () -> ()
    %cst_29 = arith.constant dense<0.000000e+00> : vector<1x8x8xf32>
    %85 = tpu.matmul %84, %73, %cst_29 {dimension_numbers = #tpu.dot_dimension_numbers<[2], [1], [1], [2], [0, 0, 0, 1, 1, 2], [0], [0]>} : vector<1x8x8xf32>, vector<1x8x8xf32>, vector<1x8x8xf32> -> vector<1x8x8xf32>
    "tpu.trace_stop"() : () -> ()
    %86 = tpu.concatenate %30, %48, %66, %84 in 2 : vector<1x8x8xf32>, vector<1x8x8xf32>, vector<1x8x8xf32>, vector<1x8x8xf32> -> vector<1x8x32xf32>
    %c0_30 = arith.constant 0 : index
    %c0_31 = arith.constant 0 : index
    %c0_32 = arith.constant 0 : index
    %87 = vector.load %arg10[%c0_30, %c0_31, %c0_32] : memref<1x8x32xf32, #tpu.memory_space<vmem>>, vector<1x8x32xf32>
    tpu.vector_store %arg10[%c0_30, %c0_31, %c0_32], %86 {strides = array<i32>} : memref<1x8x32xf32, #tpu.memory_space<vmem>>, vector<1x8x32xf32>,
    %88 = tpu.concatenate %31, %49, %67, %85 in 2 : vector<1x8x8xf32>, vector<1x8x8xf32>, vector<1x8x8xf32>, vector<1x8x8xf32> -> vector<1x8x32xf32>
    %89 = vector.shape_cast %88 : vector<1x8x32xf32> to vector<8x32xf32>
    %c0_33 = arith.constant 0 : index
    %c0_34 = arith.constant 0 : index
    %90 = vector.load %arg7[%c0_33, %c0_34] : memref<32x32xf32, #tpu.memory_space<vmem>>, vector<32x32xf32>
    %cst_35 = arith.constant dense<0.000000e+00> : vector<8x32xf32>
    %91 = tpu.matmul %89, %90, %cst_35 {dimension_numbers = #tpu.dot_dimension_numbers<[1], [0], [0], [1], [0, 0, 1, 1], [], []>} : vector<8x32xf32>, vector<32x32xf32>, vector<8x32xf32> -> vector<8x32xf32>
    %c0_36 = arith.constant 0 : index
    %c0_37 = arith.constant 0 : index
    %92 = vector.load %arg8[%c0_36, %c0_37] : memref<1x32xf32, #tpu.memory_space<vmem>>, vector<1x32xf32>
    %93 = vector.broadcast %92 : vector<1x32xf32> to vector<8x32xf32>
    %94 = arith.addf %91, %93 : vector<8x32xf32>
    %95 = vector.shape_cast %94 : vector<8x32xf32> to vector<1x8x32xf32>
    %c0_38 = arith.constant 0 : index
    %c0_39 = arith.constant 0 : index
    %c0_40 = arith.constant 0 : index
    %96 = vector.load %arg9[%c0_38, %c0_39, %c0_40] : memref<1x8x32xf32, #tpu.memory_space<vmem>>, vector<1x8x32xf32>
    tpu.vector_store %arg9[%c0_38, %c0_39, %c0_40], %95 {strides = array<i32>} : memref<1x8x32xf32, #tpu.memory_space<vmem>>, vector<1x8x32xf32>,
    return
  }
  func.func @transform_0(%arg0: i32) -> (i32, i32, i32) {
    %c0_i32 = arith.constant 0 : i32
    %c0_i32_0 = arith.constant 0 : i32
    %c0_i32_1 = arith.constant 0 : i32
    return %arg0, %c0_i32, %c0_i32_0 : i32, i32, i32
  }
  func.func @transform_1(%arg0: i32) -> (i32, i32, i32) {
    %c0_i32 = arith.constant 0 : i32
    %c0_i32_0 = arith.constant 0 : i32
    %c0_i32_1 = arith.constant 0 : i32
    return %arg0, %c0_i32, %c0_i32_0 : i32, i32, i32
  }
  func.func @transform_2(%arg0: i32) -> (i32, i32) {
    %c0_i32 = arith.constant 0 : i32
    %c0_i32_0 = arith.constant 0 : i32
    %c0_i32_1 = arith.constant 0 : i32
    return %c0_i32, %c0_i32_0 : i32, i32
  }
  func.func @transform_3(%arg0: i32) -> (i32, i32) {
    %c0_i32 = arith.constant 0 : i32
    %c0_i32_0 = arith.constant 0 : i32
    %c0_i32_1 = arith.constant 0 : i32
    return %c0_i32, %c0_i32_0 : i32, i32
  }
  func.func @transform_4(%arg0: i32) -> (i32, i32) {
    %c0_i32 = arith.constant 0 : i32
    %c0_i32_0 = arith.constant 0 : i32
    %c0_i32_1 = arith.constant 0 : i32
    return %c0_i32, %c0_i32_0 : i32, i32
  }
  func.func @transform_5(%arg0: i32) -> (i32, i32) {
    %c0_i32 = arith.constant 0 : i32
    %c0_i32_0 = arith.constant 0 : i32
    %c0_i32_1 = arith.constant 0 : i32
    return %c0_i32, %c0_i32_0 : i32, i32
  }
  func.func @transform_6(%arg0: i32) -> (i32, i32) {
    %c0_i32 = arith.constant 0 : i32
    %c0_i32_0 = arith.constant 0 : i32
    %c0_i32_1 = arith.constant 0 : i32
    return %c0_i32, %c0_i32_0 : i32, i32
  }
  func.func @transform_7(%arg0: i32) -> (i32, i32) {
    %c0_i32 = arith.constant 0 : i32
    %c0_i32_0 = arith.constant 0 : i32
    %c0_i32_1 = arith.constant 0 : i32
    return %c0_i32, %c0_i32_0 : i32, i32
  }
  func.func @transform_8(%arg0: i32) -> (i32, i32, i32) {
    %c0_i32 = arith.constant 0 : i32
    %c0_i32_0 = arith.constant 0 : i32
    %c0_i32_1 = arith.constant 0 : i32
    return %arg0, %c0_i32, %c0_i32_0 : i32, i32, i32
  }
  func.func @transform_9(%arg0: i32) -> (i32, i32, i32) {
    %c0_i32 = arith.constant 0 : i32
    %c0_i32_0 = arith.constant 0 : i32
    %c0_i32_1 = arith.constant 0 : i32
    return %arg0, %c0_i32, %c0_i32_0 : i32, i32, i32
  }
}

</mosaic_0001>

<llo_original>
// kernel: tpu_custom_call.1
$region0: #{tpu_custom_call.1}
  #allocation0 [shape = 'u32[]', space=smem, size = 0x4, offset = 0x4, fixed_abs, tag = 'smem constant byte address 0x4 - core index']
  #allocation1 [shape = 'u32[144,128]{1,0:T(1,128)}', space=vmem, size = 0x12000, scoped, tag = 'internal scratch']
  %s0 = inlined_call_operand.hbm [shape: f32[2,8,32], index: 0, kind: input, shape index: {}]
  %s1 = inlined_call_operand.hbm [shape: f32[2,8,32], index: 1, kind: input, shape index: {}]
  %s2 = inlined_call_operand.hbm [shape: f32[32,64], index: 2, kind: input, shape index: {}]
  %s3 = inlined_call_operand.vmem [shape: f32[1,64], index: 3, kind: input, shape index: {}]
  %s4 = inlined_call_operand.hbm [shape: f32[32,32], index: 4, kind: input, shape index: {}]
  %s5 = inlined_call_operand.vmem [shape: f32[1,32], index: 5, kind: input, shape index: {}]
  %s6 = inlined_call_operand.hbm [shape: f32[32,32], index: 6, kind: input, shape index: {}]
  %s7 = inlined_call_operand.vmem [shape: f32[1,32], index: 7, kind: input, shape index: {}]
  %s8 = inlined_call_operand.hbm [shape: f32[2,8,32], index: 8, kind: output, shape index: {0}]
  %s9 = inlined_call_operand.hbm [shape: f32[2,8,32], index: 9, kind: output, shape index: {1}]
  %10 = xla_tuple %s8, %s9
  %s11 = sld [smem:[#allocation0]]
  $region93: #{tpu_custom_call.1} parent=0
    _
  %s13 = ssub.s32 1, %s11
  %s14 = scalar_select 0, %s13, %s11
  $region1: #{tpu_custom_call.1} parent=0
    #allocation2 [shape = 'u8[8192]{0}', space=vmem, size = 0x2000, scoped, tag = 'input window, operand 0']
    #allocation3 [shape = 's32[2]{0}', space=sflag, size = 0x8, scoped, tag = 'scoped memory for tpu_custom_call.1']
    #allocation4 [shape = 's32[2]{0}', space=sflag, size = 0x8, scoped, tag = 'scoped memory for tpu_custom_call.1']
    #allocation5 [shape = 'u8[8192]{0}', space=vmem, size = 0x2000, scoped, tag = 'input window, operand 1']
    #allocation6 [shape = 's32[2]{0}', space=sflag, size = 0x8, scoped, tag = 'scoped memory for tpu_custom_call.1']
    #allocation7 [shape = 'u8[16384]{0}', space=vmem, size = 0x4000, scoped, tag = 'input window, operand 2, single buffered']
    #allocation8 [shape = 'u8[16384]{0}', space=vmem, size = 0x4000, scoped, tag = 'input window, operand 4, single buffered']
    #allocation9 [shape = 's32[1]{0}', space=sflag, size = 0x4, scoped, tag = 'scoped memory for tpu_custom_call.1']
    #allocation10 [shape = 'u8[16384]{0}', space=vmem, size = 0x4000, scoped, tag = 'input window, operand 6, single buffered']
    #allocation11 [shape = 'u8[8192]{0}', space=vmem, size = 0x2000, scoped, tag = 'output window, operand 0']
    #allocation12 [shape = 'u8[8192]{0}', space=vmem, size = 0x2000, scoped, tag = 'output window, operand 1']
    #allocation13 [shape = 's32[2]{0}', space=sflag, size = 0x8, scoped, tag = 'scoped memory for tpu_custom_call.1']
    %15 = vsyncpa [#allocation3], 0
    %s16 = scalar_lea.sflag [#allocation3], 1
    %17 = vsyncpa %s16, 0
    %18 = vsyncpa [#allocation6], 0
    %s19 = scalar_lea.sflag [#allocation6], 1
    %20 = vsyncpa %s19, 0
    %21 = vsyncpa [#allocation9], 0
    %22 = vsyncpa [#allocation4], 0
    %s23 = scalar_lea.sflag [#allocation4], 1
    %24 = vsyncpa %s23, 0
    %25 = vsyncpa [#allocation13], 0
    %s26 = scalar_lea.sflag [#allocation13], 1
    %27 = vsyncpa %s26, 0
    loop: start=0, step=1, limit=4
    $region2: #{tpu_custom_call.1} parent=1 // loop_pre_header
      _
    $region3: #{tpu_custom_call.1} parent=1 // loop_header
      %s29 = sphi 0, %s33
      %p30 = scmp.ge.s32.totalorder %s29, 4
      %s39 = sphi 0, %s41
      %s42 = sphi 0, %s39
      %s43 = sphi 0, %s42
      %s59 = sphi 0, %s43
      %s65 = sphi 0, %s67
      %s68 = sphi 0, %s65
      %s69 = sphi 0, %s68
      %s85 = sphi 0, %s69
      %s89 = sphi 0, %s89
      %s91 = sphi 0, %s89
      %s92 = sphi 0, %s91
      %s106 = sphi 0, %s92
      %s110 = sphi 0, %s110
      %s112 = sphi 0, %s110
      %s113 = sphi 0, %s112
      %s127 = sphi 0, %s113
      %s131 = sphi 0, %s131
      %s133 = sphi 0, %s131
      %s134 = sphi 0, %s133
      %s148 = sphi 0, %s134
      %s152 = sphi 0, %s152
      %s154 = sphi 0, %s152
      %s155 = sphi 0, %s154
      %s169 = sphi 0, %s155
      %s173 = sphi 0, %s173
      %s175 = sphi 0, %s173
      %s176 = sphi 0, %s175
      %s190 = sphi 0, %s176
      %s194 = sphi 0, %s194
      %s196 = sphi 0, %s194
      %s197 = sphi 0, %s196
      %s211 = sphi 0, %s197
      %s217 = sphi 0, %s219
      %s220 = sphi 0, %s217
      %s221 = sphi 0, %s220
      %s237 = sphi 0, %s221
      %s243 = sphi 0, %s245
      %s246 = sphi 0, %s243
      %s247 = sphi 0, %s246
      %s263 = sphi 0, %s247
    $region4: #{tpu_custom_call.1} parent=1 // loop_header_branch
      %32 = sbr.rel (%p30) target = $region8
    $region5: #{tpu_custom_call.1} parent=1 // loop_body
      %s34 = ssub.s32 %s29, 1
      %s35 = ssub.s32 %s29, 2
      %s36 = sadd.s32 %s29, 1
      %s37 = ssub.s32 %s29, %s36
      %p38 = scmp.eq.s32.totalorder %s37, 0
      %s40 = sadd.s32 %s39, 1
      %s41 = scalar_select %p38, %s39, %s40
      %p44 = pneg %p38
      %p45 = scmp.eq.s32.totalorder %s29, 1
      %p46 = por %p44, %p45
      %p47 = scmp.ne.s32.totalorder %s39, %s42
      %p48 = scmp.eq.s32.totalorder %s29, 0
      %p49 = por %p47, %p48
      %p50 = scmp.ne.s32.totalorder %s39, %s42
      %p51 = scmp.eq.s32.totalorder %s34, 1
      %p52 = por %p50, %p51
      %p53 = scmp.ne.s32.totalorder %s42, %s43
      %p54 = scmp.eq.s32.totalorder %s34, 0
      %p55 = por %p53, %p54
      %p56 = scmp.ne.s32.totalorder %s42, %s43
      %p57 = scmp.eq.s32.totalorder %s35, 1
      %p58 = por %p56, %p57
      %p60 = scmp.ne.s32.totalorder %s43, %s59
      %p61 = scmp.eq.s32.totalorder %s35, 0
      %p62 = por %p60, %p61
      %s63 = ssub.s32 %s29, %s36
      %p64 = scmp.eq.s32.totalorder %s63, 0
      %s66 = sadd.s32 %s65, 1
      %s67 = scalar_select %p64, %s65, %s66
      %p70 = pneg %p64
      %p71 = scmp.eq.s32.totalorder %s29, 1
      %p72 = por %p70, %p71
      %p73 = scmp.ne.s32.totalorder %s65, %s68
      %p74 = scmp.eq.s32.totalorder %s29, 0
      %p75 = por %p73, %p74
      %p76 = scmp.ne.s32.totalorder %s65, %s68
      %p77 = scmp.eq.s32.totalorder %s34, 1
      %p78 = por %p76, %p77
      %p79 = scmp.ne.s32.totalorder %s68, %s69
      %p80 = scmp.eq.s32.totalorder %s34, 0
      %p81 = por %p79, %p80
      %p82 = scmp.ne.s32.totalorder %s68, %s69
      %p83 = scmp.eq.s32.totalorder %s35, 1
      %p84 = por %p82, %p83
      %p86 = scmp.ne.s32.totalorder %s69, %s85
      %p87 = scmp.eq.s32.totalorder %s35, 0
      %p88 = por %p86, %p87
      %s90 = sadd.s32 %s89, 1
      %p93 = scmp.eq.s32.totalorder %s29, 1
      %p94 = scmp.ne.s32.totalorder %s89, %s91
      %p95 = scmp.eq.s32.totalorder %s29, 0
      %p96 = por %p94, %p95
      %p97 = scmp.ne.s32.totalorder %s89, %s91
      %p98 = scmp.eq.s32.totalorder %s34, 1
      %p99 = por %p97, %p98
      %p100 = scmp.ne.s32.totalorder %s91, %s92
      %p101 = scmp.eq.s32.totalorder %s34, 0
      %p102 = por %p100, %p101
      %p103 = scmp.ne.s32.totalorder %s91, %s92
      %p104 = scmp.eq.s32.totalorder %s35, 1
      %p105 = por %p103, %p104
      %p107 = scmp.ne.s32.totalorder %s92, %s106
      %p108 = scmp.eq.s32.totalorder %s35, 0
      %p109 = por %p107, %p108
      %s111 = sadd.s32 %s110, 1
      %p114 = scmp.eq.s32.totalorder %s29, 1
      %p115 = scmp.ne.s32.totalorder %s110, %s112
      %p116 = scmp.eq.s32.totalorder %s29, 0
      %p117 = por %p115, %p116
      %p118 = scmp.ne.s32.totalorder %s110, %s112
      %p119 = scmp.eq.s32.totalorder %s34, 1
      %p120 = por %p118, %p119
      %p121 = scmp.ne.s32.totalorder %s112, %s113
      %p122 = scmp.eq.s32.totalorder %s34, 0
      %p123 = por %p121, %p122
      %p124 = scmp.ne.s32.totalorder %s112, %s113
      %p125 = scmp.eq.s32.totalorder %s35, 1
      %p126 = por %p124, %p125
      %p128 = scmp.ne.s32.totalorder %s113, %s127
      %p129 = scmp.eq.s32.totalorder %s35, 0
      %p130 = por %p128, %p129
      %s132 = sadd.s32 %s131, 1
      %p135 = scmp.eq.s32.totalorder %s29, 1
      %p136 = scmp.ne.s32.totalorder %s131, %s133
      %p137 = scmp.eq.s32.totalorder %s29, 0
      %p138 = por %p136, %p137
      %p139 = scmp.ne.s32.totalorder %s131, %s133
      %p140 = scmp.eq.s32.totalorder %s34, 1
      %p141 = por %p139, %p140
      %p142 = scmp.ne.s32.totalorder %s133, %s134
      %p143 = scmp.eq.s32.totalorder %s34, 0
      %p144 = por %p142, %p143
      %p145 = scmp.ne.s32.totalorder %s133, %s134
      %p146 = scmp.eq.s32.totalorder %s35, 1
      %p147 = por %p145, %p146
      %p149 = scmp.ne.s32.totalorder %s134, %s148
      %p150 = scmp.eq.s32.totalorder %s35, 0
      %p151 = por %p149, %p150
      %s153 = sadd.s32 %s152, 1
      %p156 = scmp.eq.s32.totalorder %s29, 1
      %p157 = scmp.ne.s32.totalorder %s152, %s154
      %p158 = scmp.eq.s32.totalorder %s29, 0
      %p159 = por %p157, %p158
      %p160 = scmp.ne.s32.totalorder %s152, %s154
      %p161 = scmp.eq.s32.totalorder %s34, 1
      %p162 = por %p160, %p161
      %p163 = scmp.ne.s32.totalorder %s154, %s155
      %p164 = scmp.eq.s32.totalorder %s34, 0
      %p165 = por %p163, %p164
      %p166 = scmp.ne.s32.totalorder %s154, %s155
      %p167 = scmp.eq.s32.totalorder %s35, 1
      %p168 = por %p166, %p167
      %p170 = scmp.ne.s32.totalorder %s155, %s169
      %p171 = scmp.eq.s32.totalorder %s35, 0
      %p172 = por %p170, %p171
      %s174 = sadd.s32 %s173, 1
      %p177 = scmp.eq.s32.totalorder %s29, 1
      %p178 = scmp.ne.s32.totalorder %s173, %s175
      %p179 = scmp.eq.s32.totalorder %s29, 0
      %p180 = por %p178, %p179
      %p181 = scmp.ne.s32.totalorder %s173, %s175
      %p182 = scmp.eq.s32.totalorder %s34, 1
      %p183 = por %p181, %p182
      %p184 = scmp.ne.s32.totalorder %s175, %s176
      %p185 = scmp.eq.s32.totalorder %s34, 0
      %p186 = por %p184, %p185
      %p187 = scmp.ne.s32.totalorder %s175, %s176
      %p188 = scmp.eq.s32.totalorder %s35, 1
      %p189 = por %p187, %p188
      %p191 = scmp.ne.s32.totalorder %s176, %s190
      %p192 = scmp.eq.s32.totalorder %s35, 0
      %p193 = por %p191, %p192
      %s195 = sadd.s32 %s194, 1
      %p198 = scmp.eq.s32.totalorder %s29, 1
      %p199 = scmp.ne.s32.totalorder %s194, %s196
      %p200 = scmp.eq.s32.totalorder %s29, 0
      %p201 = por %p199, %p200
      %p202 = scmp.ne.s32.totalorder %s194, %s196
      %p203 = scmp.eq.s32.totalorder %s34, 1
      %p204 = por %p202, %p203
      %p205 = scmp.ne.s32.totalorder %s196, %s197
      %p206 = scmp.eq.s32.totalorder %s34, 0
      %p207 = por %p205, %p206
      %p208 = scmp.ne.s32.totalorder %s196, %s197
      %p209 = scmp.eq.s32.totalorder %s35, 1
      %p210 = por %p208, %p209
      %p212 = scmp.ne.s32.totalorder %s197, %s211
      %p213 = scmp.eq.s32.totalorder %s35, 0
      %p214 = por %p212, %p213
      %s215 = ssub.s32 %s29, %s36
      %p216 = scmp.eq.s32.totalorder %s215, 0
      %s218 = sadd.s32 %s217, 1
      %s219 = scalar_select %p216, %s217, %s218
      %p222 = pneg %p216
      %p223 = scmp.eq.s32.totalorder %s29, 1
      %p224 = por %p222, %p223
      %p225 = scmp.ne.s32.totalorder %s217, %s220
      %p226 = scmp.eq.s32.totalorder %s29, 0
      %p227 = por %p225, %p226
      %p228 = scmp.ne.s32.totalorder %s217, %s220
      %p229 = scmp.eq.s32.totalorder %s34, 1
      %p230 = por %p228, %p229
      %p231 = scmp.ne.s32.totalorder %s220, %s221
      %p232 = scmp.eq.s32.totalorder %s34, 0
      %p233 = por %p231, %p232
      %p234 = scmp.ne.s32.totalorder %s220, %s221
      %p235 = scmp.eq.s32.totalorder %s35, 1
      %p236 = por %p234, %p235
      %p238 = scmp.ne.s32.totalorder %s221, %s237
      %p239 = scmp.eq.s32.totalorder %s35, 0
      %p240 = por %p238, %p239
      %s241 = ssub.s32 %s29, %s36
      %p242 = scmp.eq.s32.totalorder %s241, 0
      %s244 = sadd.s32 %s243, 1
      %s245 = scalar_select %p242, %s243, %s244
      %p248 = pneg %p242
      %p249 = scmp.eq.s32.totalorder %s29, 1
      %p250 = por %p248, %p249
      %p251 = scmp.ne.s32.totalorder %s243, %s246
      %p252 = scmp.eq.s32.totalorder %s29, 0
      %p253 = por %p251, %p252
      %p254 = scmp.ne.s32.totalorder %s243, %s246
      %p255 = scmp.eq.s32.totalorder %s34, 1
      %p256 = por %p254, %p255
      %p257 = scmp.ne.s32.totalorder %s246, %s247
      %p258 = scmp.eq.s32.totalorder %s34, 0
      %p259 = por %p257, %p258
      %p260 = scmp.ne.s32.totalorder %s246, %s247
      %p261 = scmp.eq.s32.totalorder %s35, 1
      %p262 = por %p260, %p261
      %p264 = scmp.ne.s32.totalorder %s247, %s263
      %p265 = scmp.eq.s32.totalorder %s35, 0
      %p266 = por %p264, %p265
      %p267 = scmp.le.s32.totalorder 1, %s29
      %p268 = scmp.lt.s32.totalorder %s29, 3
      %p269 = pnand %p267, %p268
      %p270 = pneg %p269
      // Predicated region
      $region9: #{tpu_custom_call.1} parent=5 // pred_check
        _
      $region10: #{tpu_custom_call.1} parent=5 // pred_check_branch
        %272 = sbr.rel (%p269) target = $region12
      $region11: #{tpu_custom_call.1} parent=5 // pred_region
        %s273 = ssub.s32 %s29, 1
        // Predicated region
        $region13: #{tpu_custom_call.1} parent=11 // pred_check
          %p274 = pneg %p102
        $region14: #{tpu_custom_call.1} parent=11 // pred_check_branch
          %276 = sbr.rel (%p274) target = $region16
        $region15: #{tpu_custom_call.1} parent=11 // pred_region
          %s278 = ssub.s32 512, 512
          %279 = vsyncadd [#allocation6], %s278
          %s280 = sshll.u32 [#allocation7], 4
          %s281 = int_to_ptr.vmem [resolvable:$true] %s280
          %286 = dma.hbm_to_vmem [thread:$0]  %s2, 512, %s281, [#allocation6], 128, 128, 8
        $region16: #{tpu_custom_call.1} parent=11 // pred_fallthru
          _
        // Predicated region
        $region17: #{tpu_custom_call.1} parent=11 // pred_check
          %p287 = pneg %p123
        $region18: #{tpu_custom_call.1} parent=11 // pred_check_branch
          %289 = sbr.rel (%p287) target = $region20
        $region19: #{tpu_custom_call.1} parent=11 // pred_region
          _
        $region20: #{tpu_custom_call.1} parent=11 // pred_fallthru
          _
        // Predicated region
        $region21: #{tpu_custom_call.1} parent=11 // pred_check
          %p290 = pneg %p144
        $region22: #{tpu_custom_call.1} parent=11 // pred_check_branch
          %292 = sbr.rel (%p290) target = $region24
        $region23: #{tpu_custom_call.1} parent=11 // pred_region
          %s294 = ssub.s32 512, 512
          %295 = vsyncadd [#allocation9], %s294
          %s296 = sshll.u32 [#allocation8], 4
          %s297 = int_to_ptr.vmem [resolvable:$true] %s296
          %302 = dma.hbm_to_vmem [thread:$0]  %s4, 512, %s297, [#allocation9], 128, 128, 8
        $region24: #{tpu_custom_call.1} parent=11 // pred_fallthru
          _
        // Predicated region
        $region25: #{tpu_custom_call.1} parent=11 // pred_check
          %p303 = pneg %p165
        $region26: #{tpu_custom_call.1} parent=11 // pred_check_branch
          %305 = sbr.rel (%p303) target = $region28
        $region27: #{tpu_custom_call.1} parent=11 // pred_region
          _
        $region28: #{tpu_custom_call.1} parent=11 // pred_fallthru
          _
        // Predicated region
        $region29: #{tpu_custom_call.1} parent=11 // pred_check
          %p306 = pneg %p186
        $region30: #{tpu_custom_call.1} parent=11 // pred_check_branch
          %308 = sbr.rel (%p306) target = $region32
        $region31: #{tpu_custom_call.1} parent=11 // pred_region
          %s310 = ssub.s32 512, 512
          %311 = vsyncadd [#allocation9], %s310
          %s312 = sshll.u32 [#allocation10], 4
          %s313 = int_to_ptr.vmem [resolvable:$true] %s312
          %318 = dma.hbm_to_vmem [thread:$0]  %s6, 512, %s313, [#allocation9], 128, 128, 8
        $region32: #{tpu_custom_call.1} parent=11 // pred_fallthru
          _
        // Predicated region
        $region33: #{tpu_custom_call.1} parent=11 // pred_check
          %p319 = pneg %p207
        $region34: #{tpu_custom_call.1} parent=11 // pred_check_branch
          %321 = sbr.rel (%p319) target = $region36
        $region35: #{tpu_custom_call.1} parent=11 // pred_region
          _
        $region36: #{tpu_custom_call.1} parent=11 // pred_fallthru
          _
      $region12: #{tpu_custom_call.1} parent=5 // pred_fallthru
        _
      %p322 = scmp.lt.s32.totalorder %s29, 2
      // Predicated region
      $region37: #{tpu_custom_call.1} parent=5 // pred_check
        %p323 = pneg %p322
      $region38: #{tpu_custom_call.1} parent=5 // pred_check_branch
        %325 = sbr.rel (%p323) target = $region40
      $region39: #{tpu_custom_call.1} parent=5 // pred_region
        // Predicated region
        $region41: #{tpu_custom_call.1} parent=39 // pred_check
          %p326 = pneg %p49
        $region42: #{tpu_custom_call.1} parent=39 // pred_check_branch
          %328 = sbr.rel (%p326) target = $region44
        $region43: #{tpu_custom_call.1} parent=39 // pred_region
          %s329 = sand.u32 %s39, 1
          %s330 = scalar_lea.sflag [#allocation3], %s329
          %s331 = sand.u32 %s39, 1
          %s332 = smul.addr %s331, 8
          %s333 = scalar_lea.vmem [#allocation2], %s332
          %s335 = ssub.s32 128, 128
          %336 = vsyncadd %s330, %s335
          %s337 = smul.addr %s29, 128
          %s338 = scalar_lea.hbm %s0, %s337
          %s340 = sshll.u32 %s333, 4
          %s341 = int_to_ptr.vmem [resolvable:$true] %s340
          %343 = dma.hbm_to_vmem [thread:$0]  %s338, 128, %s341, %s330
        $region44: #{tpu_custom_call.1} parent=39 // pred_fallthru
          _
        // Predicated region
        $region45: #{tpu_custom_call.1} parent=39 // pred_check
          %p344 = pneg %p75
        $region46: #{tpu_custom_call.1} parent=39 // pred_check_branch
          %346 = sbr.rel (%p344) target = $region48
        $region47: #{tpu_custom_call.1} parent=39 // pred_region
          %s347 = sand.u32 %s29, 1
          %s348 = scalar_lea.sflag [#allocation6], %s347
          %s349 = sand.u32 %s65, 1
          %s350 = smul.addr %s349, 8
          %s351 = scalar_lea.vmem [#allocation5], %s350
          %s353 = ssub.s32 128, 128
          %354 = vsyncadd %s348, %s353
          %s355 = smul.addr %s29, 128
          %s356 = scalar_lea.hbm %s1, %s355
          %s358 = sshll.u32 %s351, 4
          %s359 = int_to_ptr.vmem [resolvable:$true] %s358
          %361 = dma.hbm_to_vmem [thread:$0]  %s356, 128, %s359, %s348
        $region48: #{tpu_custom_call.1} parent=39 // pred_fallthru
          _
      $region40: #{tpu_custom_call.1} parent=5 // pred_fallthru
        _
      %p362 = scmp.le.s32.totalorder 1, %s29
      %p363 = scmp.lt.s32.totalorder %s29, 3
      %p364 = pnand %p362, %p363
      %p365 = pneg %p364
      // Predicated region
      $region49: #{tpu_custom_call.1} parent=5 // pred_check
        _
      $region50: #{tpu_custom_call.1} parent=5 // pred_check_branch
        %367 = sbr.rel (%p364) target = $region52
      $region51: #{tpu_custom_call.1} parent=5 // pred_region
        %s368 = ssub.s32 %s29, 1
        %s369 = sand.u32 %s42, 1
        %s370 = scalar_lea.sflag [#allocation3], %s369
        %s371 = sand.u32 %s42, 1
        %s372 = smul.addr %s371, 8
        %s373 = scalar_lea.vmem [#allocation2], %s372
        // Predicated region
        $region53: #{tpu_custom_call.1} parent=51 // pred_check
          %p374 = pneg %p55
        $region54: #{tpu_custom_call.1} parent=51 // pred_check_branch
          %376 = sbr.rel (%p374) target = $region56
        $region55: #{tpu_custom_call.1} parent=51 // pred_region
          %377 = dma.done %s370, 128
        $region56: #{tpu_custom_call.1} parent=51 // pred_fallthru
          _
        %s378 = sand.u32 %s34, 1
        %s379 = scalar_lea.sflag [#allocation6], %s378
        %s380 = sand.u32 %s68, 1
        %s381 = smul.addr %s380, 8
        %s382 = scalar_lea.vmem [#allocation5], %s381
        // Predicated region
        $region57: #{tpu_custom_call.1} parent=51 // pred_check
          %p383 = pneg %p81
        $region58: #{tpu_custom_call.1} parent=51 // pred_check_branch
          %385 = sbr.rel (%p383) target = $region60
        $region59: #{tpu_custom_call.1} parent=51 // pred_region
          %386 = dma.done %s379, 128
        $region60: #{tpu_custom_call.1} parent=51 // pred_fallthru
          _
        // Predicated region
        $region61: #{tpu_custom_call.1} parent=51 // pred_check
          %p387 = pneg %p102
        $region62: #{tpu_custom_call.1} parent=51 // pred_check_branch
          %389 = sbr.rel (%p387) target = $region64
        $region63: #{tpu_custom_call.1} parent=51 // pred_region
          %390 = dma.done [#allocation6], 512
        $region64: #{tpu_custom_call.1} parent=51 // pred_fallthru
          _
        // Predicated region
        $region65: #{tpu_custom_call.1} parent=51 // pred_check
          %p391 = pneg %p144
        $region66: #{tpu_custom_call.1} parent=51 // pred_check_branch
          %393 = sbr.rel (%p391) target = $region68
        $region67: #{tpu_custom_call.1} parent=51 // pred_region
          %394 = dma.done [#allocation9], 512
        $region68: #{tpu_custom_call.1} parent=51 // pred_fallthru
          _
        // Predicated region
        $region69: #{tpu_custom_call.1} parent=51 // pred_check
          %p395 = pneg %p186
        $region70: #{tpu_custom_call.1} parent=51 // pred_check_branch
          %397 = sbr.rel (%p395) target = $region72
        $region71: #{tpu_custom_call.1} parent=51 // pred_region
          %398 = dma.done [#allocation9], 512
        $region72: #{tpu_custom_call.1} parent=51 // pred_fallthru
          _
        %s399 = sand.u32 %s42, 1
        %s400 = scalar_lea.sflag [#allocation3], %s399
        %s401 = sand.u32 %s42, 1
        %s402 = smul.addr %s401, 8
        %s403 = scalar_lea.vmem [#allocation2], %s402
        %p404 = pneg %p55
        %p405 = pneg %p52
        %s406 = sand.u32 %s34, 1
        %s407 = scalar_lea.sflag [#allocation6], %s406
        %s408 = sand.u32 %s68, 1
        %s409 = smul.addr %s408, 8
        %s410 = scalar_lea.vmem [#allocation5], %s409
        %p411 = pneg %p81
        %p412 = pneg %p78
        %p413 = pneg %p102
        %p414 = pneg %p99
        %p415 = pneg %p123
        %p416 = pneg %p120
        %p417 = pneg %p144
        %p418 = pneg %p141
        %p419 = pneg %p165
        %p420 = pneg %p162
        %p421 = pneg %p186
        %p422 = pneg %p183
        %p423 = pneg %p207
        %p424 = pneg %p204
        %p425 = pneg %p233
        %p426 = pneg %p230
        %s427 = sand.u32 %s220, 1
        %s428 = scalar_lea.sflag [#allocation4], %s427
        %s429 = sand.u32 %s220, 1
        %s430 = smul.addr %s429, 8
        %s431 = scalar_lea.vmem [#allocation11], %s430
        %p432 = pneg %p259
        %p433 = pneg %p256
        %s434 = sand.u32 %s246, 1
        %s435 = scalar_lea.sflag [#allocation13], %s434
        %s436 = sand.u32 %s246, 1
        %s437 = smul.addr %s436, 8
        %s438 = scalar_lea.vmem [#allocation12], %s437
        %v439 = vld [vmem:[%s373] sm:$0xff]
        %v440 = vld [vmem:[%s382] sm:$0xff]
        %v441 = vld [vmem:[#allocation7] sm:$0xff]
        %v442 = vld [vmem:[#allocation7 + $0x8] sm:$0xff]
        %v443 = vld [vmem:[#allocation7 + $0x10] sm:$0xff]
        %v444 = vld [vmem:[#allocation7 + $0x18] sm:$0xff]
        %v445 = vld [vmem:[%s3] sm:$0x1]
        %v447 = vlaneseq
        %v448 = vshrl.u32 %v447, 7
        %v449 = vsub.s32 0, %v448
        %v450 = vrot.slane %v445, %v449
        %vm452 = vcmask 261120
        %v454 = vsel %vm452, %v439, 0
        %456 = vmatprep.subr.mxu0 0.0
        %457 = vmatpush1.msra.mxu0 %v441
        %458 = vmatprep.subr.mxu0 0.0
        %459 = vmatpush1.msra.mxu0 %v442
        %460 = vmatprep.subr.mxu0 0.0
        %461 = vmatpush1.msra.mxu0 %v443
        %462 = vmatprep.subr.mxu0 0.0
        %463 = vmatpush1.msra.mxu0 %v444
        %464 = vmatprep.subr.mxu0 0.0
        %465 = vmatpush1.msra.mxu0 0.0
        %466 = vmatprep.subr.mxu0 0.0
        %467 = vmatpush1.msra.mxu0 0.0
        %468 = vmatprep.subr.mxu0 0.0
        %469 = vmatpush1.msra.mxu0 0.0
        %470 = vmatprep.subr.mxu0 0.0
        %471 = vmatpush1.msra.mxu0 0.0
        %472 = vmatprep.subr.mxu0 0.0
        %473 = vmatpush1.msra.mxu0 0.0
        %474 = vmatprep.subr.mxu0 0.0
        %475 = vmatpush1.msra.mxu0 0.0
        %476 = vmatprep.subr.mxu0 0.0
        %477 = vmatpush1.msra.mxu0 0.0
        %478 = vmatprep.subr.mxu0 0.0
        %479 = vmatpush1.msra.mxu0 0.0
        %480 = vmatprep.subr.mxu0 0.0
        %481 = vmatpush1.msra.mxu0 0.0
        %482 = vmatprep.subr.mxu0 0.0
        %483 = vmatpush1.msra.mxu0 0.0
        %484 = vmatprep.subr.mxu0 0.0
        %485 = vmatpush1.msra.mxu0 0.0
        %486 = vmatprep.subr.mxu0 0.0
        %487 = vmatpush1.msra.mxu0 0.0
        %488 = vmatprep.subr.mxu0 0.0
        %489 = vmatpush1.msra.mxu0 0.0
        %490 = vmatprep.subr.mxu0 0.0
        %491 = vmatpush1.msra.mxu0 0.0
        %492 = vmatprep.subr.mxu0 0.0
        %493 = vmatpush1.msra.mxu0 0.0
        %494 = vmatprep.subr.mxu0 0.0
        %495 = vmatpush1.msra.mxu0 0.0
        %496 = vmatprep.subr.mxu0 0.0
        %497 = vmatpush1.msra.mxu0 0.0
        %498 = vmatprep.subr.mxu0 0.0
        %499 = vmatpush1.msra.mxu0 0.0
        %500 = vmatprep.subr.mxu0 0.0
        %501 = vmatpush1.msra.mxu0 0.0
        %502 = vmatprep.subr.mxu0 0.0
        %503 = vmatpush1.msra.mxu0 0.0
        %504 = vmatprep.subr.mxu0 0.0
        %505 = vmatpush1.msra.mxu0 0.0
        %506 = vmatprep.subr.mxu0 0.0
        %507 = vmatpush1.msra.mxu0 0.0
        %508 = vmatprep.subr.mxu0 0.0
        %509 = vmatpush1.msra.mxu0 0.0
        %510 = vmatprep.subr.mxu0 0.0
        %511 = vmatpush1.msra.mxu0 0.0
        %512 = vmatprep.subr.mxu0 0.0
        %513 = vmatpush1.msra.mxu0 0.0
        %514 = vmatprep.subr.mxu0 0.0
        %515 = vmatpush1.msra.mxu0 0.0
        %516 = vmatprep.subr.mxu0 0.0
        %517 = vmatpush1.msra.mxu0 0.0
        %518 = vmatprep.subr.mxu0 0.0
        %519 = vmatpush1.msra.mxu0 0.0
        %520 = vmatprep.mubr.f32.mxu0 0.0
        %521 = vmatmul.mubr.f32.gmra.mrb[0].mxu0 %v454
        %v522 = vpop.f32.mrb[0].mxu0
        %v523 = vadd.f32 %v450, %v522
        %v524 = vpop.f32.mrb[0].mxu0
        %525 = vdwg.mxu0
        %v526 = vld [vmem:[#allocation8] sm:$0xff]
        %v527 = vld [vmem:[#allocation8 + $0x8] sm:$0xff]
        %v528 = vld [vmem:[#allocation8 + $0x10] sm:$0xff]
        %v529 = vld [vmem:[#allocation8 + $0x18] sm:$0xff]
        %v530 = vld [vmem:[%s5] sm:$0x1]
        %v532 = vlaneseq
        %v533 = vshrl.u32 %v532, 7
        %v534 = vsub.s32 0, %v533
        %v535 = vrot.slane %v530, %v534
        %v538 = vsel %vm452, %v440, 0
        %540 = vmatprep.subr.mxu0 0.0
        %541 = vmatpush1.msra.mxu0 %v526
        %542 = vmatprep.subr.mxu0 0.0
        %543 = vmatpush1.msra.mxu0 %v527
        %544 = vmatprep.subr.mxu0 0.0
        %545 = vmatpush1.msra.mxu0 %v528
        %546 = vmatprep.subr.mxu0 0.0
        %547 = vmatpush1.msra.mxu0 %v529
        %548 = vmatprep.subr.mxu0 0.0
        %549 = vmatpush1.msra.mxu0 0.0
        %550 = vmatprep.subr.mxu0 0.0
        %551 = vmatpush1.msra.mxu0 0.0
        %552 = vmatprep.subr.mxu0 0.0
        %553 = vmatpush1.msra.mxu0 0.0
        %554 = vmatprep.subr.mxu0 0.0
        %555 = vmatpush1.msra.mxu0 0.0
        %556 = vmatprep.subr.mxu0 0.0
        %557 = vmatpush1.msra.mxu0 0.0
        %558 = vmatprep.subr.mxu0 0.0
        %559 = vmatpush1.msra.mxu0 0.0
        %560 = vmatprep.subr.mxu0 0.0
        %561 = vmatpush1.msra.mxu0 0.0
        %562 = vmatprep.subr.mxu0 0.0
        %563 = vmatpush1.msra.mxu0 0.0
        %564 = vmatprep.subr.mxu0 0.0
        %565 = vmatpush1.msra.mxu0 0.0
        %566 = vmatprep.subr.mxu0 0.0
        %567 = vmatpush1.msra.mxu0 0.0
        %568 = vmatprep.subr.mxu0 0.0
        %569 = vmatpush1.msra.mxu0 0.0
        %570 = vmatprep.subr.mxu0 0.0
        %571 = vmatpush1.msra.mxu0 0.0
        %572 = vmatprep.subr.mxu0 0.0
        %573 = vmatpush1.msra.mxu0 0.0
        %574 = vmatprep.subr.mxu0 0.0
        %575 = vmatpush1.msra.mxu0 0.0
        %576 = vmatprep.subr.mxu0 0.0
        %577 = vmatpush1.msra.mxu0 0.0
        %578 = vmatprep.subr.mxu0 0.0
        %579 = vmatpush1.msra.mxu0 0.0
        %580 = vmatprep.subr.mxu0 0.0
        %581 = vmatpush1.msra.mxu0 0.0
        %582 = vmatprep.subr.mxu0 0.0
        %583 = vmatpush1.msra.mxu0 0.0
        %584 = vmatprep.subr.mxu0 0.0
        %585 = vmatpush1.msra.mxu0 0.0
        %586 = vmatprep.subr.mxu0 0.0
        %587 = vmatpush1.msra.mxu0 0.0
        %588 = vmatprep.subr.mxu0 0.0
        %589 = vmatpush1.msra.mxu0 0.0
        %590 = vmatprep.subr.mxu0 0.0
        %591 = vmatpush1.msra.mxu0 0.0
        %592 = vmatprep.subr.mxu0 0.0
        %593 = vmatpush1.msra.mxu0 0.0
        %594 = vmatprep.subr.mxu0 0.0
        %595 = vmatpush1.msra.mxu0 0.0
        %596 = vmatprep.subr.mxu0 0.0
        %597 = vmatpush1.msra.mxu0 0.0
        %598 = vmatprep.subr.mxu0 0.0
        %599 = vmatpush1.msra.mxu0 0.0
        %600 = vmatprep.subr.mxu0 0.0
        %601 = vmatpush1.msra.mxu0 0.0
        %602 = vmatprep.subr.mxu0 0.0
        %603 = vmatpush1.msra.mxu0 0.0
        %604 = vmatprep.mubr.f32.mxu0 0.0
        %605 = vmatmul.mubr.f32.gmra.mrb[0].mxu0 %v538
        %v606 = vpop.f32.mrb[0].mxu0
        %v607 = vadd.f32 %v535, %v606
        %v608 = vpop.f32.mrb[0].mxu0
        %609 = vdwg.mxu0
        %611 = vrot.lane.b32.xlu0 %v523, 96
        %v612 = vpop.permute.xlu0 %611
        %vm613 = vcmask 64512
        %v614 = vsel %vm613, %v523, 0
        %v616 = vsel %vm613, %v612, 0
        %618 = vmatprep.subr.mxu0 0.0
        %619 = vmatpush1.xpose.msra.mxu0 %v616
        %620 = vmatprep.subr.mxu0 0.0
        %621 = vmatpush1.xpose.msra.mxu0 0.0
        %622 = vmatprep.subr.mxu0 0.0
        %623 = vmatpush1.xpose.msra.mxu0 0.0
        %624 = vmatprep.subr.mxu0 0.0
        %625 = vmatpush1.xpose.msra.mxu0 0.0
        %626 = vmatprep.subr.mxu0 0.0
        %627 = vmatpush1.xpose.msra.mxu0 0.0
        %628 = vmatprep.subr.mxu0 0.0
        %629 = vmatpush1.xpose.msra.mxu0 0.0
        %630 = vmatprep.subr.mxu0 0.0
        %631 = vmatpush1.xpose.msra.mxu0 0.0
        %632 = vmatprep.subr.mxu0 0.0
        %633 = vmatpush1.xpose.msra.mxu0 0.0
        %634 = vmatprep.subr.mxu0 0.0
        %635 = vmatpush1.xpose.msra.mxu0 0.0
        %636 = vmatprep.subr.mxu0 0.0
        %637 = vmatpush1.xpose.msra.mxu0 0.0
        %638 = vmatprep.subr.mxu0 0.0
        %639 = vmatpush1.xpose.msra.mxu0 0.0
        %640 = vmatprep.subr.mxu0 0.0
        %641 = vmatpush1.xpose.msra.mxu0 0.0
        %642 = vmatprep.subr.mxu0 0.0
        %643 = vmatpush1.xpose.msra.mxu0 0.0
        %644 = vmatprep.subr.mxu0 0.0
        %645 = vmatpush1.xpose.msra.mxu0 0.0
        %646 = vmatprep.subr.mxu0 0.0
        %647 = vmatpush1.xpose.msra.mxu0 0.0
        %648 = vmatprep.subr.mxu0 0.0
        %649 = vmatpush1.xpose.msra.mxu0 0.0
        %650 = vmatprep.subr.mxu0 0.0
        %651 = vmatpush1.xpose.msra.mxu0 0.0
        %652 = vmatprep.subr.mxu0 0.0
        %653 = vmatpush1.xpose.msra.mxu0 0.0
        %654 = vmatprep.subr.mxu0 0.0
        %655 = vmatpush1.xpose.msra.mxu0 0.0
        %656 = vmatprep.subr.mxu0 0.0
        %657 = vmatpush1.xpose.msra.mxu0 0.0
        %658 = vmatprep.subr.mxu0 0.0
        %659 = vmatpush1.xpose.msra.mxu0 0.0
        %660 = vmatprep.subr.mxu0 0.0
        %661 = vmatpush1.xpose.msra.mxu0 0.0
        %662 = vmatprep.subr.mxu0 0.0
        %663 = vmatpush1.xpose.msra.mxu0 0.0
        %664 = vmatprep.subr.mxu0 0.0
        %665 = vmatpush1.xpose.msra.mxu0 0.0
        %666 = vmatprep.subr.mxu0 0.0
        %667 = vmatpush1.xpose.msra.mxu0 0.0
        %668 = vmatprep.subr.mxu0 0.0
        %669 = vmatpush1.xpose.msra.mxu0 0.0
        %670 = vmatprep.subr.mxu0 0.0
        %671 = vmatpush1.xpose.msra.mxu0 0.0
        %672 = vmatprep.subr.mxu0 0.0
        %673 = vmatpush1.xpose.msra.mxu0 0.0
        %674 = vmatprep.subr.mxu0 0.0
        %675 = vmatpush1.xpose.msra.mxu0 0.0
        %676 = vmatprep.subr.mxu0 0.0
        %677 = vmatpush1.xpose.msra.mxu0 0.0
        %678 = vmatprep.subr.mxu0 0.0
        %679 = vmatpush1.xpose.msra.mxu0 0.0
        %680 = vmatprep.subr.mxu0 0.0
        %681 = vmatpush1.xpose.msra.mxu0 0.0
        %682 = vmatprep.mubr.f32.mxu0 0.0
        %683 = vmatmul.mubr.f32.gmra.mrb[0].mxu0 %v614
        %v684 = vpop.f32.mrb[0].mxu0
        %v685 = vadd.f32 0.0, %v684
        %v686 = vpop.f32.mrb[0].mxu0
        %687 = vdwg.mxu0
        %v688 = vsel %vm613, %v685, -inf
        %689 = vmax.xlane.f32.xlu0 %v688
        %v690 = vpop.xlane.xlu0 %689
        %v691 = vsub.f32 %v685, %v690
        %v692 = vmul.f32 %v691, 1.442695
        %v693 = vpow.pop %v692
        %v694 = vsel %vm613, %v693, 0.0
        %695 = vadd.xlane.f32.xlu0 %v694
        %v696 = vpop.xlane.xlu0 %695
        %v697 = vrcp.pop %v696
        %v698 = vmul.f32 %v693, %v697
        %v700 = vsel %vm613, %v698, 0
        %702 = vmatprep.subr.mxu0 0.0
        %703 = vmatpush1.msra.mxu0 %v607
        %704 = vmatprep.subr.mxu0 0.0
        %705 = vmatpush1.msra.mxu0 0.0
        %706 = vmatprep.subr.mxu0 0.0
        %707 = vmatpush1.msra.mxu0 0.0
        %708 = vmatprep.subr.mxu0 0.0
        %709 = vmatpush1.msra.mxu0 0.0
        %710 = vmatprep.subr.mxu0 0.0
        %711 = vmatpush1.msra.mxu0 0.0
        %712 = vmatprep.subr.mxu0 0.0
        %713 = vmatpush1.msra.mxu0 0.0
        %714 = vmatprep.subr.mxu0 0.0
        %715 = vmatpush1.msra.mxu0 0.0
        %716 = vmatprep.subr.mxu0 0.0
        %717 = vmatpush1.msra.mxu0 0.0
        %718 = vmatprep.subr.mxu0 0.0
        %719 = vmatpush1.msra.mxu0 0.0
        %720 = vmatprep.subr.mxu0 0.0
        %721 = vmatpush1.msra.mxu0 0.0
        %722 = vmatprep.subr.mxu0 0.0
        %723 = vmatpush1.msra.mxu0 0.0
        %724 = vmatprep.subr.mxu0 0.0
        %725 = vmatpush1.msra.mxu0 0.0
        %726 = vmatprep.subr.mxu0 0.0
        %727 = vmatpush1.msra.mxu0 0.0
        %728 = vmatprep.subr.mxu0 0.0
        %729 = vmatpush1.msra.mxu0 0.0
        %730 = vmatprep.subr.mxu0 0.0
        %731 = vmatpush1.msra.mxu0 0.0
        %732 = vmatprep.subr.mxu0 0.0
        %733 = vmatpush1.msra.mxu0 0.0
        %734 = vmatprep.subr.mxu0 0.0
        %735 = vmatpush1.msra.mxu0 0.0
        %736 = vmatprep.subr.mxu0 0.0
        %737 = vmatpush1.msra.mxu0 0.0
        %738 = vmatprep.subr.mxu0 0.0
        %739 = vmatpush1.msra.mxu0 0.0
        %740 = vmatprep.subr.mxu0 0.0
        %741 = vmatpush1.msra.mxu0 0.0
        %742 = vmatprep.subr.mxu0 0.0
        %743 = vmatpush1.msra.mxu0 0.0
        %744 = vmatprep.subr.mxu0 0.0
        %745 = vmatpush1.msra.mxu0 0.0
        %746 = vmatprep.subr.mxu0 0.0
        %747 = vmatpush1.msra.mxu0 0.0
        %748 = vmatprep.subr.mxu0 0.0
        %749 = vmatpush1.msra.mxu0 0.0
        %750 = vmatprep.subr.mxu0 0.0
        %751 = vmatpush1.msra.mxu0 0.0
        %752 = vmatprep.subr.mxu0 0.0
        %753 = vmatpush1.msra.mxu0 0.0
        %754 = vmatprep.subr.mxu0 0.0
        %755 = vmatpush1.msra.mxu0 0.0
        %756 = vmatprep.subr.mxu0 0.0
        %757 = vmatpush1.msra.mxu0 0.0
        %758 = vmatprep.subr.mxu0 0.0
        %759 = vmatpush1.msra.mxu0 0.0
        %760 = vmatprep.subr.mxu0 0.0
        %761 = vmatpush1.msra.mxu0 0.0
        %762 = vmatprep.subr.mxu0 0.0
        %763 = vmatpush1.msra.mxu0 0.0
        %764 = vmatprep.subr.mxu0 0.0
        %765 = vmatpush1.msra.mxu0 0.0
        %766 = vmatprep.mubr.f32.mxu0 0.0
        %767 = vmatmul.mubr.f32.gmra.mrb[0].mxu0 %v700
        %v768 = vpop.f32.mrb[0].mxu0
        %v769 = vadd.f32 0.0, %v768
        %v770 = vpop.f32.mrb[0].mxu0
        %771 = vdwg.mxu0
        %772 = vrot.lane.b32.xlu0 %v523, 120
        %v773 = vpop.permute.xlu0 %772
        %774 = vrot.lane.b32.xlu0 %v523, 88
        %v775 = vpop.permute.xlu0 %774
        %v776 = vsel %vm613, %v773, 0
        %v778 = vsel %vm613, %v775, 0
        %780 = vmatprep.subr.mxu0 0.0
        %781 = vmatpush1.xpose.msra.mxu0 %v778
        %782 = vmatprep.subr.mxu0 0.0
        %783 = vmatpush1.xpose.msra.mxu0 0.0
        %784 = vmatprep.subr.mxu0 0.0
        %785 = vmatpush1.xpose.msra.mxu0 0.0
        %786 = vmatprep.subr.mxu0 0.0
        %787 = vmatpush1.xpose.msra.mxu0 0.0
        %788 = vmatprep.subr.mxu0 0.0
        %789 = vmatpush1.xpose.msra.mxu0 0.0
        %790 = vmatprep.subr.mxu0 0.0
        %791 = vmatpush1.xpose.msra.mxu0 0.0
        %792 = vmatprep.subr.mxu0 0.0
        %793 = vmatpush1.xpose.msra.mxu0 0.0
        %794 = vmatprep.subr.mxu0 0.0
        %795 = vmatpush1.xpose.msra.mxu0 0.0
        %796 = vmatprep.subr.mxu0 0.0
        %797 = vmatpush1.xpose.msra.mxu0 0.0
        %798 = vmatprep.subr.mxu0 0.0
        %799 = vmatpush1.xpose.msra.mxu0 0.0
        %800 = vmatprep.subr.mxu0 0.0
        %801 = vmatpush1.xpose.msra.mxu0 0.0
        %802 = vmatprep.subr.mxu0 0.0
        %803 = vmatpush1.xpose.msra.mxu0 0.0
        %804 = vmatprep.subr.mxu0 0.0
        %805 = vmatpush1.xpose.msra.mxu0 0.0
        %806 = vmatprep.subr.mxu0 0.0
        %807 = vmatpush1.xpose.msra.mxu0 0.0
        %808 = vmatprep.subr.mxu0 0.0
        %809 = vmatpush1.xpose.msra.mxu0 0.0
        %810 = vmatprep.subr.mxu0 0.0
        %811 = vmatpush1.xpose.msra.mxu0 0.0
        %812 = vmatprep.subr.mxu0 0.0
        %813 = vmatpush1.xpose.msra.mxu0 0.0
        %814 = vmatprep.subr.mxu0 0.0
        %815 = vmatpush1.xpose.msra.mxu0 0.0
        %816 = vmatprep.subr.mxu0 0.0
        %817 = vmatpush1.xpose.msra.mxu0 0.0
        %818 = vmatprep.subr.mxu0 0.0
        %819 = vmatpush1.xpose.msra.mxu0 0.0
        %820 = vmatprep.subr.mxu0 0.0
        %821 = vmatpush1.xpose.msra.mxu0 0.0
        %822 = vmatprep.subr.mxu0 0.0
        %823 = vmatpush1.xpose.msra.mxu0 0.0
        %824 = vmatprep.subr.mxu0 0.0
        %825 = vmatpush1.xpose.msra.mxu0 0.0
        %826 = vmatprep.subr.mxu0 0.0
        %827 = vmatpush1.xpose.msra.mxu0 0.0
        %828 = vmatprep.subr.mxu0 0.0
        %829 = vmatpush1.xpose.msra.mxu0 0.0
        %830 = vmatprep.subr.mxu0 0.0
        %831 = vmatpush1.xpose.msra.mxu0 0.0
        %832 = vmatprep.subr.mxu0 0.0
        %833 = vmatpush1.xpose.msra.mxu0 0.0
        %834 = vmatprep.subr.mxu0 0.0
        %835 = vmatpush1.xpose.msra.mxu0 0.0
        %836 = vmatprep.subr.mxu0 0.0
        %837 = vmatpush1.xpose.msra.mxu0 0.0
        %838 = vmatprep.subr.mxu0 0.0
        %839 = vmatpush1.xpose.msra.mxu0 0.0
        %840 = vmatprep.subr.mxu0 0.0
        %841 = vmatpush1.xpose.msra.mxu0 0.0
        %842 = vmatprep.subr.mxu0 0.0
        %843 = vmatpush1.xpose.msra.mxu0 0.0
        %844 = vmatprep.mubr.f32.mxu0 0.0
        %845 = vmatmul.mubr.f32.gmra.mrb[0].mxu0 %v776
        %v846 = vpop.f32.mrb[0].mxu0
        %v847 = vadd.f32 0.0, %v846
        %v848 = vpop.f32.mrb[0].mxu0
        %849 = vdwg.mxu0
        %v850 = vsel %vm613, %v847, -inf
        %851 = vmax.xlane.f32.xlu0 %v850
        %v852 = vpop.xlane.xlu0 %851
        %v853 = vsub.f32 %v847, %v852
        %v854 = vmul.f32 %v853, 1.442695
        %v855 = vpow.pop %v854
        %v856 = vsel %vm613, %v855, 0.0
        %857 = vadd.xlane.f32.xlu0 %v856
        %v858 = vpop.xlane.xlu0 %857
        %v859 = vrcp.pop %v858
        %v860 = vmul.f32 %v855, %v859
        %862 = vrot.lane.b32.xlu0 %v607, 120
        %v863 = vpop.permute.xlu0 %862
        %v866 = vsel %vm613, %v860, 0
        %868 = vmatprep.subr.mxu0 0.0
        %869 = vmatpush1.msra.mxu0 %v863
        %870 = vmatprep.subr.mxu0 0.0
        %871 = vmatpush1.msra.mxu0 0.0
        %872 = vmatprep.subr.mxu0 0.0
        %873 = vmatpush1.msra.mxu0 0.0
        %874 = vmatprep.subr.mxu0 0.0
        %875 = vmatpush1.msra.mxu0 0.0
        %876 = vmatprep.subr.mxu0 0.0
        %877 = vmatpush1.msra.mxu0 0.0
        %878 = vmatprep.subr.mxu0 0.0
        %879 = vmatpush1.msra.mxu0 0.0
        %880 = vmatprep.subr.mxu0 0.0
        %881 = vmatpush1.msra.mxu0 0.0
        %882 = vmatprep.subr.mxu0 0.0
        %883 = vmatpush1.msra.mxu0 0.0
        %884 = vmatprep.subr.mxu0 0.0
        %885 = vmatpush1.msra.mxu0 0.0
        %886 = vmatprep.subr.mxu0 0.0
        %887 = vmatpush1.msra.mxu0 0.0
        %888 = vmatprep.subr.mxu0 0.0
        %889 = vmatpush1.msra.mxu0 0.0
        %890 = vmatprep.subr.mxu0 0.0
        %891 = vmatpush1.msra.mxu0 0.0
        %892 = vmatprep.subr.mxu0 0.0
        %893 = vmatpush1.msra.mxu0 0.0
        %894 = vmatprep.subr.mxu0 0.0
        %895 = vmatpush1.msra.mxu0 0.0
        %896 = vmatprep.subr.mxu0 0.0
        %897 = vmatpush1.msra.mxu0 0.0
        %898 = vmatprep.subr.mxu0 0.0
        %899 = vmatpush1.msra.mxu0 0.0
        %900 = vmatprep.subr.mxu0 0.0
        %901 = vmatpush1.msra.mxu0 0.0
        %902 = vmatprep.subr.mxu0 0.0
        %903 = vmatpush1.msra.mxu0 0.0
        %904 = vmatprep.subr.mxu0 0.0
        %905 = vmatpush1.msra.mxu0 0.0
        %906 = vmatprep.subr.mxu0 0.0
        %907 = vmatpush1.msra.mxu0 0.0
        %908 = vmatprep.subr.mxu0 0.0
        %909 = vmatpush1.msra.mxu0 0.0
        %910 = vmatprep.subr.mxu0 0.0
        %911 = vmatpush1.msra.mxu0 0.0
        %912 = vmatprep.subr.mxu0 0.0
        %913 = vmatpush1.msra.mxu0 0.0
        %914 = vmatprep.subr.mxu0 0.0
        %915 = vmatpush1.msra.mxu0 0.0
        %916 = vmatprep.subr.mxu0 0.0
        %917 = vmatpush1.msra.mxu0 0.0
        %918 = vmatprep.subr.mxu0 0.0
        %919 = vmatpush1.msra.mxu0 0.0
        %920 = vmatprep.subr.mxu0 0.0
        %921 = vmatpush1.msra.mxu0 0.0
        %922 = vmatprep.subr.mxu0 0.0
        %923 = vmatpush1.msra.mxu0 0.0
        %924 = vmatprep.subr.mxu0 0.0
        %925 = vmatpush1.msra.mxu0 0.0
        %926 = vmatprep.subr.mxu0 0.0
        %927 = vmatpush1.msra.mxu0 0.0
        %928 = vmatprep.subr.mxu0 0.0
        %929 = vmatpush1.msra.mxu0 0.0
        %930 = vmatprep.subr.mxu0 0.0
        %931 = vmatpush1.msra.mxu0 0.0
        %932 = vmatprep.mubr.f32.mxu0 0.0
        %933 = vmatmul.mubr.f32.gmra.mrb[0].mxu0 %v866
        %v934 = vpop.f32.mrb[0].mxu0
        %v935 = vadd.f32 0.0, %v934
        %v936 = vpop.f32.mrb[0].mxu0
        %937 = vdwg.mxu0
        %938 = vrot.lane.b32.xlu0 %v523, 112
        %v939 = vpop.permute.xlu0 %938
        %940 = vrot.lane.b32.xlu0 %v523, 80
        %v941 = vpop.permute.xlu0 %940
        %v942 = vsel %vm613, %v939, 0
        %v944 = vsel %vm613, %v941, 0
        %946 = vmatprep.subr.mxu0 0.0
        %947 = vmatpush1.xpose.msra.mxu0 %v944
        %948 = vmatprep.subr.mxu0 0.0
        %949 = vmatpush1.xpose.msra.mxu0 0.0
        %950 = vmatprep.subr.mxu0 0.0
        %951 = vmatpush1.xpose.msra.mxu0 0.0
        %952 = vmatprep.subr.mxu0 0.0
        %953 = vmatpush1.xpose.msra.mxu0 0.0
        %954 = vmatprep.subr.mxu0 0.0
        %955 = vmatpush1.xpose.msra.mxu0 0.0
        %956 = vmatprep.subr.mxu0 0.0
        %957 = vmatpush1.xpose.msra.mxu0 0.0
        %958 = vmatprep.subr.mxu0 0.0
        %959 = vmatpush1.xpose.msra.mxu0 0.0
        %960 = vmatprep.subr.mxu0 0.0
        %961 = vmatpush1.xpose.msra.mxu0 0.0
        %962 = vmatprep.subr.mxu0 0.0
        %963 = vmatpush1.xpose.msra.mxu0 0.0
        %964 = vmatprep.subr.mxu0 0.0
        %965 = vmatpush1.xpose.msra.mxu0 0.0
        %966 = vmatprep.subr.mxu0 0.0
        %967 = vmatpush1.xpose.msra.mxu0 0.0
        %968 = vmatprep.subr.mxu0 0.0
        %969 = vmatpush1.xpose.msra.mxu0 0.0
        %970 = vmatprep.subr.mxu0 0.0
        %971 = vmatpush1.xpose.msra.mxu0 0.0
        %972 = vmatprep.subr.mxu0 0.0
        %973 = vmatpush1.xpose.msra.mxu0 0.0
        %974 = vmatprep.subr.mxu0 0.0
        %975 = vmatpush1.xpose.msra.mxu0 0.0
        %976 = vmatprep.subr.mxu0 0.0
        %977 = vmatpush1.xpose.msra.mxu0 0.0
        %978 = vmatprep.subr.mxu0 0.0
        %979 = vmatpush1.xpose.msra.mxu0 0.0
        %980 = vmatprep.subr.mxu0 0.0
        %981 = vmatpush1.xpose.msra.mxu0 0.0
        %982 = vmatprep.subr.mxu0 0.0
        %983 = vmatpush1.xpose.msra.mxu0 0.0
        %984 = vmatprep.subr.mxu0 0.0
        %985 = vmatpush1.xpose.msra.mxu0 0.0
        %986 = vmatprep.subr.mxu0 0.0
        %987 = vmatpush1.xpose.msra.mxu0 0.0
        %988 = vmatprep.subr.mxu0 0.0
        %989 = vmatpush1.xpose.msra.mxu0 0.0
        %990 = vmatprep.subr.mxu0 0.0
        %991 = vmatpush1.xpose.msra.mxu0 0.0
        %992 = vmatprep.subr.mxu0 0.0
        %993 = vmatpush1.xpose.msra.mxu0 0.0
        %994 = vmatprep.subr.mxu0 0.0
        %995 = vmatpush1.xpose.msra.mxu0 0.0
        %996 = vmatprep.subr.mxu0 0.0
        %997 = vmatpush1.xpose.msra.mxu0 0.0
        %998 = vmatprep.subr.mxu0 0.0
        %999 = vmatpush1.xpose.msra.mxu0 0.0
        %1000 = vmatprep.subr.mxu0 0.0
        %1001 = vmatpush1.xpose.msra.mxu0 0.0
        %1002 = vmatprep.subr.mxu0 0.0
        %1003 = vmatpush1.xpose.msra.mxu0 0.0
        %1004 = vmatprep.subr.mxu0 0.0
        %1005 = vmatpush1.xpose.msra.mxu0 0.0
        %1006 = vmatprep.subr.mxu0 0.0
        %1007 = vmatpush1.xpose.msra.mxu0 0.0
        %1008 = vmatprep.subr.mxu0 0.0
        %1009 = vmatpush1.xpose.msra.mxu0 0.0
        %1010 = vmatprep.mubr.f32.mxu0 0.0
        %1011 = vmatmul.mubr.f32.gmra.mrb[0].mxu0 %v942
        %v1012 = vpop.f32.mrb[0].mxu0
        %v1013 = vadd.f32 0.0, %v1012
        %v1014 = vpop.f32.mrb[0].mxu0
        %1015 = vdwg.mxu0
        %v1016 = vsel %vm613, %v1013, -inf
        %1017 = vmax.xlane.f32.xlu0 %v1016
        %v1018 = vpop.xlane.xlu0 %1017
        %v1019 = vsub.f32 %v1013, %v1018
        %v1020 = vmul.f32 %v1019, 1.442695
        %v1021 = vpow.pop %v1020
        %v1022 = vsel %vm613, %v1021, 0.0
        %1023 = vadd.xlane.f32.xlu0 %v1022
        %v1024 = vpop.xlane.xlu0 %1023
        %v1025 = vrcp.pop %v1024
        %v1026 = vmul.f32 %v1021, %v1025
        %1027 = vrot.lane.b32.xlu0 %v607, 112
        %v1028 = vpop.permute.xlu0 %1027
        %v1031 = vsel %vm613, %v1026, 0
        %1033 = vmatprep.subr.mxu0 0.0
        %1034 = vmatpush1.msra.mxu0 %v1028
        %1035 = vmatprep.subr.mxu0 0.0
        %1036 = vmatpush1.msra.mxu0 0.0
        %1037 = vmatprep.subr.mxu0 0.0
        %1038 = vmatpush1.msra.mxu0 0.0
        %1039 = vmatprep.subr.mxu0 0.0
        %1040 = vmatpush1.msra.mxu0 0.0
        %1041 = vmatprep.subr.mxu0 0.0
        %1042 = vmatpush1.msra.mxu0 0.0
        %1043 = vmatprep.subr.mxu0 0.0
        %1044 = vmatpush1.msra.mxu0 0.0
        %1045 = vmatprep.subr.mxu0 0.0
        %1046 = vmatpush1.msra.mxu0 0.0
        %1047 = vmatprep.subr.mxu0 0.0
        %1048 = vmatpush1.msra.mxu0 0.0
        %1049 = vmatprep.subr.mxu0 0.0
        %1050 = vmatpush1.msra.mxu0 0.0
        %1051 = vmatprep.subr.mxu0 0.0
        %1052 = vmatpush1.msra.mxu0 0.0
        %1053 = vmatprep.subr.mxu0 0.0
        %1054 = vmatpush1.msra.mxu0 0.0
        %1055 = vmatprep.subr.mxu0 0.0
        %1056 = vmatpush1.msra.mxu0 0.0
        %1057 = vmatprep.subr.mxu0 0.0
        %1058 = vmatpush1.msra.mxu0 0.0
        %1059 = vmatprep.subr.mxu0 0.0
        %1060 = vmatpush1.msra.mxu0 0.0
        %1061 = vmatprep.subr.mxu0 0.0
        %1062 = vmatpush1.msra.mxu0 0.0
        %1063 = vmatprep.subr.mxu0 0.0
        %1064 = vmatpush1.msra.mxu0 0.0
        %1065 = vmatprep.subr.mxu0 0.0
        %1066 = vmatpush1.msra.mxu0 0.0
        %1067 = vmatprep.subr.mxu0 0.0
        %1068 = vmatpush1.msra.mxu0 0.0
        %1069 = vmatprep.subr.mxu0 0.0
        %1070 = vmatpush1.msra.mxu0 0.0
        %1071 = vmatprep.subr.mxu0 0.0
        %1072 = vmatpush1.msra.mxu0 0.0
        %1073 = vmatprep.subr.mxu0 0.0
        %1074 = vmatpush1.msra.mxu0 0.0
        %1075 = vmatprep.subr.mxu0 0.0
        %1076 = vmatpush1.msra.mxu0 0.0
        %1077 = vmatprep.subr.mxu0 0.0
        %1078 = vmatpush1.msra.mxu0 0.0
        %1079 = vmatprep.subr.mxu0 0.0
        %1080 = vmatpush1.msra.mxu0 0.0
        %1081 = vmatprep.subr.mxu0 0.0
        %1082 = vmatpush1.msra.mxu0 0.0
        %1083 = vmatprep.subr.mxu0 0.0
        %1084 = vmatpush1.msra.mxu0 0.0
        %1085 = vmatprep.subr.mxu0 0.0
        %1086 = vmatpush1.msra.mxu0 0.0
        %1087 = vmatprep.subr.mxu0 0.0
        %1088 = vmatpush1.msra.mxu0 0.0
        %1089 = vmatprep.subr.mxu0 0.0
        %1090 = vmatpush1.msra.mxu0 0.0
        %1091 = vmatprep.subr.mxu0 0.0
        %1092 = vmatpush1.msra.mxu0 0.0
        %1093 = vmatprep.subr.mxu0 0.0
        %1094 = vmatpush1.msra.mxu0 0.0
        %1095 = vmatprep.subr.mxu0 0.0
        %1096 = vmatpush1.msra.mxu0 0.0
        %1097 = vmatprep.mubr.f32.mxu0 0.0
        %1098 = vmatmul.mubr.f32.gmra.mrb[0].mxu0 %v1031
        %v1099 = vpop.f32.mrb[0].mxu0
        %v1100 = vadd.f32 0.0, %v1099
        %v1101 = vpop.f32.mrb[0].mxu0
        %1102 = vdwg.mxu0
        %1103 = vrot.lane.b32.xlu0 %v523, 104
        %v1104 = vpop.permute.xlu0 %1103
        %1105 = vrot.lane.b32.xlu0 %v523, 72
        %v1106 = vpop.permute.xlu0 %1105
        %v1107 = vsel %vm613, %v1104, 0
        %v1109 = vsel %vm613, %v1106, 0
        %1111 = vmatprep.subr.mxu0 0.0
        %1112 = vmatpush1.xpose.msra.mxu0 %v1109
        %1113 = vmatprep.subr.mxu0 0.0
        %1114 = vmatpush1.xpose.msra.mxu0 0.0
        %1115 = vmatprep.subr.mxu0 0.0
        %1116 = vmatpush1.xpose.msra.mxu0 0.0
        %1117 = vmatprep.subr.mxu0 0.0
        %1118 = vmatpush1.xpose.msra.mxu0 0.0
        %1119 = vmatprep.subr.mxu0 0.0
        %1120 = vmatpush1.xpose.msra.mxu0 0.0
        %1121 = vmatprep.subr.mxu0 0.0
        %1122 = vmatpush1.xpose.msra.mxu0 0.0
        %1123 = vmatprep.subr.mxu0 0.0
        %1124 = vmatpush1.xpose.msra.mxu0 0.0
        %1125 = vmatprep.subr.mxu0 0.0
        %1126 = vmatpush1.xpose.msra.mxu0 0.0
        %1127 = vmatprep.subr.mxu0 0.0
        %1128 = vmatpush1.xpose.msra.mxu0 0.0
        %1129 = vmatprep.subr.mxu0 0.0
        %1130 = vmatpush1.xpose.msra.mxu0 0.0
        %1131 = vmatprep.subr.mxu0 0.0
        %1132 = vmatpush1.xpose.msra.mxu0 0.0
        %1133 = vmatprep.subr.mxu0 0.0
        %1134 = vmatpush1.xpose.msra.mxu0 0.0
        %1135 = vmatprep.subr.mxu0 0.0
        %1136 = vmatpush1.xpose.msra.mxu0 0.0
        %1137 = vmatprep.subr.mxu0 0.0
        %1138 = vmatpush1.xpose.msra.mxu0 0.0
        %1139 = vmatprep.subr.mxu0 0.0
        %1140 = vmatpush1.xpose.msra.mxu0 0.0
        %1141 = vmatprep.subr.mxu0 0.0
        %1142 = vmatpush1.xpose.msra.mxu0 0.0
        %1143 = vmatprep.subr.mxu0 0.0
        %1144 = vmatpush1.xpose.msra.mxu0 0.0
        %1145 = vmatprep.subr.mxu0 0.0
        %1146 = vmatpush1.xpose.msra.mxu0 0.0
        %1147 = vmatprep.subr.mxu0 0.0
        %1148 = vmatpush1.xpose.msra.mxu0 0.0
        %1149 = vmatprep.subr.mxu0 0.0
        %1150 = vmatpush1.xpose.msra.mxu0 0.0
        %1151 = vmatprep.subr.mxu0 0.0
        %1152 = vmatpush1.xpose.msra.mxu0 0.0
        %1153 = vmatprep.subr.mxu0 0.0
        %1154 = vmatpush1.xpose.msra.mxu0 0.0
        %1155 = vmatprep.subr.mxu0 0.0
        %1156 = vmatpush1.xpose.msra.mxu0 0.0
        %1157 = vmatprep.subr.mxu0 0.0
        %1158 = vmatpush1.xpose.msra.mxu0 0.0
        %1159 = vmatprep.subr.mxu0 0.0
        %1160 = vmatpush1.xpose.msra.mxu0 0.0
        %1161 = vmatprep.subr.mxu0 0.0
        %1162 = vmatpush1.xpose.msra.mxu0 0.0
        %1163 = vmatprep.subr.mxu0 0.0
        %1164 = vmatpush1.xpose.msra.mxu0 0.0
        %1165 = vmatprep.subr.mxu0 0.0
        %1166 = vmatpush1.xpose.msra.mxu0 0.0
        %1167 = vmatprep.subr.mxu0 0.0
        %1168 = vmatpush1.xpose.msra.mxu0 0.0
        %1169 = vmatprep.subr.mxu0 0.0
        %1170 = vmatpush1.xpose.msra.mxu0 0.0
        %1171 = vmatprep.subr.mxu0 0.0
        %1172 = vmatpush1.xpose.msra.mxu0 0.0
        %1173 = vmatprep.subr.mxu0 0.0
        %1174 = vmatpush1.xpose.msra.mxu0 0.0
        %1175 = vmatprep.mubr.f32.mxu0 0.0
        %1176 = vmatmul.mubr.f32.gmra.mrb[0].mxu0 %v1107
        %v1177 = vpop.f32.mrb[0].mxu0
        %v1178 = vadd.f32 0.0, %v1177
        %v1179 = vpop.f32.mrb[0].mxu0
        %1180 = vdwg.mxu0
        %v1181 = vsel %vm613, %v1178, -inf
        %1182 = vmax.xlane.f32.xlu0 %v1181
        %v1183 = vpop.xlane.xlu0 %1182
        %v1184 = vsub.f32 %v1178, %v1183
        %v1185 = vmul.f32 %v1184, 1.442695
        %v1186 = vpow.pop %v1185
        %v1187 = vsel %vm613, %v1186, 0.0
        %1188 = vadd.xlane.f32.xlu0 %v1187
        %v1189 = vpop.xlane.xlu0 %1188
        %v1190 = vrcp.pop %v1189
        %v1191 = vmul.f32 %v1186, %v1190
        %1192 = vrot.lane.b32.xlu0 %v607, 104
        %v1193 = vpop.permute.xlu0 %1192
        %v1196 = vsel %vm613, %v1191, 0
        %1198 = vmatprep.subr.mxu0 0.0
        %1199 = vmatpush1.msra.mxu0 %v1193
        %1200 = vmatprep.subr.mxu0 0.0
        %1201 = vmatpush1.msra.mxu0 0.0
        %1202 = vmatprep.subr.mxu0 0.0
        %1203 = vmatpush1.msra.mxu0 0.0
        %1204 = vmatprep.subr.mxu0 0.0
        %1205 = vmatpush1.msra.mxu0 0.0
        %1206 = vmatprep.subr.mxu0 0.0
        %1207 = vmatpush1.msra.mxu0 0.0
        %1208 = vmatprep.subr.mxu0 0.0
        %1209 = vmatpush1.msra.mxu0 0.0
        %1210 = vmatprep.subr.mxu0 0.0
        %1211 = vmatpush1.msra.mxu0 0.0
        %1212 = vmatprep.subr.mxu0 0.0
        %1213 = vmatpush1.msra.mxu0 0.0
        %1214 = vmatprep.subr.mxu0 0.0
        %1215 = vmatpush1.msra.mxu0 0.0
        %1216 = vmatprep.subr.mxu0 0.0
        %1217 = vmatpush1.msra.mxu0 0.0
        %1218 = vmatprep.subr.mxu0 0.0
        %1219 = vmatpush1.msra.mxu0 0.0
        %1220 = vmatprep.subr.mxu0 0.0
        %1221 = vmatpush1.msra.mxu0 0.0
        %1222 = vmatprep.subr.mxu0 0.0
        %1223 = vmatpush1.msra.mxu0 0.0
        %1224 = vmatprep.subr.mxu0 0.0
        %1225 = vmatpush1.msra.mxu0 0.0
        %1226 = vmatprep.subr.mxu0 0.0
        %1227 = vmatpush1.msra.mxu0 0.0
        %1228 = vmatprep.subr.mxu0 0.0
        %1229 = vmatpush1.msra.mxu0 0.0
        %1230 = vmatprep.subr.mxu0 0.0
        %1231 = vmatpush1.msra.mxu0 0.0
        %1232 = vmatprep.subr.mxu0 0.0
        %1233 = vmatpush1.msra.mxu0 0.0
        %1234 = vmatprep.subr.mxu0 0.0
        %1235 = vmatpush1.msra.mxu0 0.0
        %1236 = vmatprep.subr.mxu0 0.0
        %1237 = vmatpush1.msra.mxu0 0.0
        %1238 = vmatprep.subr.mxu0 0.0
        %1239 = vmatpush1.msra.mxu0 0.0
        %1240 = vmatprep.subr.mxu0 0.0
        %1241 = vmatpush1.msra.mxu0 0.0
        %1242 = vmatprep.subr.mxu0 0.0
        %1243 = vmatpush1.msra.mxu0 0.0
        %1244 = vmatprep.subr.mxu0 0.0
        %1245 = vmatpush1.msra.mxu0 0.0
        %1246 = vmatprep.subr.mxu0 0.0
        %1247 = vmatpush1.msra.mxu0 0.0
        %1248 = vmatprep.subr.mxu0 0.0
        %1249 = vmatpush1.msra.mxu0 0.0
        %1250 = vmatprep.subr.mxu0 0.0
        %1251 = vmatpush1.msra.mxu0 0.0
        %1252 = vmatprep.subr.mxu0 0.0
        %1253 = vmatpush1.msra.mxu0 0.0
        %1254 = vmatprep.subr.mxu0 0.0
        %1255 = vmatpush1.msra.mxu0 0.0
        %1256 = vmatprep.subr.mxu0 0.0
        %1257 = vmatpush1.msra.mxu0 0.0
        %1258 = vmatprep.subr.mxu0 0.0
        %1259 = vmatpush1.msra.mxu0 0.0
        %1260 = vmatprep.subr.mxu0 0.0
        %1261 = vmatpush1.msra.mxu0 0.0
        %1262 = vmatprep.mubr.f32.mxu0 0.0
        %1263 = vmatmul.mubr.f32.gmra.mrb[0].mxu0 %v1196
        %v1264 = vpop.f32.mrb[0].mxu0
        %v1265 = vadd.f32 0.0, %v1264
        %v1266 = vpop.f32.mrb[0].mxu0
        %1267 = vdwg.mxu0
        %1268 = vrot.lane.b32.xlu0 %v860, 8
        %v1269 = vpop.permute.xlu0 %1268
        %1271 = vrot.lane.b32.xlu0 %v1026, 16
        %v1272 = vpop.permute.xlu0 %1271
        %1274 = vrot.lane.b32.xlu0 %v1191, 24
        %v1275 = vpop.permute.xlu0 %1274
        %v1277 = vsel %vm613, %v698, %v1269
        %vm1278 = vcmask 130048
        %v1279 = vsel %vm1278, %v1277, %v1272
        %vm1280 = vcmask 195584
        %v1281 = vsel %vm1280, %v1279, %v1275
        %1282 = vst.msk [vmem:[%s438] sm:$0xff] %vm452, %v1281
        %1284 = vrot.lane.b32.xlu0 %v935, 8
        %v1285 = vpop.permute.xlu0 %1284
        %1288 = vrot.lane.b32.xlu0 %v1100, 16
        %v1289 = vpop.permute.xlu0 %1288
        %1292 = vrot.lane.b32.xlu0 %v1265, 24
        %v1293 = vpop.permute.xlu0 %1292
        %v1295 = vsel %vm613, %v769, %v1285
        %v1296 = vsel %vm1278, %v1295, %v1289
        %v1297 = vsel %vm1280, %v1296, %v1293
        %v1298 = vld [vmem:[#allocation10] sm:$0xff]
        %v1299 = vld [vmem:[#allocation10 + $0x8] sm:$0xff]
        %v1300 = vld [vmem:[#allocation10 + $0x10] sm:$0xff]
        %v1301 = vld [vmem:[#allocation10 + $0x18] sm:$0xff]
        %v1302 = vld [vmem:[%s7] sm:$0x1]
        %v1304 = vlaneseq
        %v1305 = vshrl.u32 %v1304, 7
        %v1306 = vsub.s32 0, %v1305
        %v1307 = vrot.slane %v1302, %v1306
        %v1310 = vsel %vm452, %v1297, 0
        %1312 = vmatprep.subr.mxu0 0.0
        %1313 = vmatpush1.msra.mxu0 %v1298
        %1314 = vmatprep.subr.mxu0 0.0
        %1315 = vmatpush1.msra.mxu0 %v1299
        %1316 = vmatprep.subr.mxu0 0.0
        %1317 = vmatpush1.msra.mxu0 %v1300
        %1318 = vmatprep.subr.mxu0 0.0
        %1319 = vmatpush1.msra.mxu0 %v1301
        %1320 = vmatprep.subr.mxu0 0.0
        %1321 = vmatpush1.msra.mxu0 0.0
        %1322 = vmatprep.subr.mxu0 0.0
        %1323 = vmatpush1.msra.mxu0 0.0
        %1324 = vmatprep.subr.mxu0 0.0
        %1325 = vmatpush1.msra.mxu0 0.0
        %1326 = vmatprep.subr.mxu0 0.0
        %1327 = vmatpush1.msra.mxu0 0.0
        %1328 = vmatprep.subr.mxu0 0.0
        %1329 = vmatpush1.msra.mxu0 0.0
        %1330 = vmatprep.subr.mxu0 0.0
        %1331 = vmatpush1.msra.mxu0 0.0
        %1332 = vmatprep.subr.mxu0 0.0
        %1333 = vmatpush1.msra.mxu0 0.0
        %1334 = vmatprep.subr.mxu0 0.0
        %1335 = vmatpush1.msra.mxu0 0.0
        %1336 = vmatprep.subr.mxu0 0.0
        %1337 = vmatpush1.msra.mxu0 0.0
        %1338 = vmatprep.subr.mxu0 0.0
        %1339 = vmatpush1.msra.mxu0 0.0
        %1340 = vmatprep.subr.mxu0 0.0
        %1341 = vmatpush1.msra.mxu0 0.0
        %1342 = vmatprep.subr.mxu0 0.0
        %1343 = vmatpush1.msra.mxu0 0.0
        %1344 = vmatprep.subr.mxu0 0.0
        %1345 = vmatpush1.msra.mxu0 0.0
        %1346 = vmatprep.subr.mxu0 0.0
        %1347 = vmatpush1.msra.mxu0 0.0
        %1348 = vmatprep.subr.mxu0 0.0
        %1349 = vmatpush1.msra.mxu0 0.0
        %1350 = vmatprep.subr.mxu0 0.0
        %1351 = vmatpush1.msra.mxu0 0.0
        %1352 = vmatprep.subr.mxu0 0.0
        %1353 = vmatpush1.msra.mxu0 0.0
        %1354 = vmatprep.subr.mxu0 0.0
        %1355 = vmatpush1.msra.mxu0 0.0
        %1356 = vmatprep.subr.mxu0 0.0
        %1357 = vmatpush1.msra.mxu0 0.0
        %1358 = vmatprep.subr.mxu0 0.0
        %1359 = vmatpush1.msra.mxu0 0.0
        %1360 = vmatprep.subr.mxu0 0.0
        %1361 = vmatpush1.msra.mxu0 0.0
        %1362 = vmatprep.subr.mxu0 0.0
        %1363 = vmatpush1.msra.mxu0 0.0
        %1364 = vmatprep.subr.mxu0 0.0
        %1365 = vmatpush1.msra.mxu0 0.0
        %1366 = vmatprep.subr.mxu0 0.0
        %1367 = vmatpush1.msra.mxu0 0.0
        %1368 = vmatprep.subr.mxu0 0.0
        %1369 = vmatpush1.msra.mxu0 0.0
        %1370 = vmatprep.subr.mxu0 0.0
        %1371 = vmatpush1.msra.mxu0 0.0
        %1372 = vmatprep.subr.mxu0 0.0
        %1373 = vmatpush1.msra.mxu0 0.0
        %1374 = vmatprep.subr.mxu0 0.0
        %1375 = vmatpush1.msra.mxu0 0.0
        %1376 = vmatprep.mubr.f32.mxu0 0.0
        %1377 = vmatmul.mubr.f32.gmra.mrb[0].mxu0 %v1310
        %v1378 = vpop.f32.mrb[0].mxu0
        %v1379 = vadd.f32 %v1307, %v1378
        %v1380 = vpop.f32.mrb[0].mxu0
        %1381 = vdwg.mxu0
        %1382 = vst.msk [vmem:[%s431] sm:$0xff] %vm452, %v1379
        %s1383 = sand.u32 %s220, 1
        %s1384 = scalar_lea.sflag [#allocation4], %s1383
        %s1385 = sand.u32 %s220, 1
        %s1386 = smul.addr %s1385, 8
        %s1387 = scalar_lea.vmem [#allocation11], %s1386
        %s1388 = sand.u32 %s246, 1
        %s1389 = scalar_lea.sflag [#allocation13], %s1388
        %s1390 = sand.u32 %s246, 1
        %s1391 = smul.addr %s1390, 8
        %s1392 = scalar_lea.vmem [#allocation12], %s1391
        // Predicated region
        $region73: #{tpu_custom_call.1} parent=51 // pred_check
          %p1393 = pneg %p230
        $region74: #{tpu_custom_call.1} parent=51 // pred_check_branch
          %1395 = sbr.rel (%p1393) target = $region76
        $region75: #{tpu_custom_call.1} parent=51 // pred_region
          %s1397 = ssub.s32 128, 128
          %1398 = vsyncadd %s1384, %s1397
          %s1399 = smul.addr %s34, 128
          %s1400 = scalar_lea.hbm %s8, %s1399
          %s1402 = sshll.u32 %s1387, 4
          %s1403 = int_to_ptr.vmem [resolvable:$true] %s1402
          %1405 = dma.vmem_to_hbm [thread:$0]  %s1403, 128, %s1400, %s1384
        $region76: #{tpu_custom_call.1} parent=51 // pred_fallthru
          _
        // Predicated region
        $region77: #{tpu_custom_call.1} parent=51 // pred_check
          %p1406 = pneg %p256
        $region78: #{tpu_custom_call.1} parent=51 // pred_check_branch
          %1408 = sbr.rel (%p1406) target = $region80
        $region79: #{tpu_custom_call.1} parent=51 // pred_region
          %s1410 = ssub.s32 128, 128
          %1411 = vsyncadd %s1389, %s1410
          %s1412 = smul.addr %s34, 128
          %s1413 = scalar_lea.hbm %s9, %s1412
          %s1415 = sshll.u32 %s1392, 4
          %s1416 = int_to_ptr.vmem [resolvable:$true] %s1415
          %1418 = dma.vmem_to_hbm [thread:$0]  %s1416, 128, %s1413, %s1389
        $region80: #{tpu_custom_call.1} parent=51 // pred_fallthru
          _
      $region52: #{tpu_custom_call.1} parent=5 // pred_fallthru
        _
      %p1419 = scmp.le.s32.totalorder 2, %s29
      // Predicated region
      $region81: #{tpu_custom_call.1} parent=5 // pred_check
        %p1420 = pneg %p1419
      $region82: #{tpu_custom_call.1} parent=5 // pred_check_branch
        %1422 = sbr.rel (%p1420) target = $region84
      $region83: #{tpu_custom_call.1} parent=5 // pred_region
        %s1423 = ssub.s32 %s29, 2
        // Predicated region
        $region85: #{tpu_custom_call.1} parent=83 // pred_check
          %p1424 = pneg %p236
        $region86: #{tpu_custom_call.1} parent=83 // pred_check_branch
          %1426 = sbr.rel (%p1424) target = $region88
        $region87: #{tpu_custom_call.1} parent=83 // pred_region
          %s1427 = sand.u32 %s221, 1
          %s1428 = scalar_lea.sflag [#allocation4], %s1427
          %s1429 = sand.u32 %s221, 1
          %s1430 = smul.addr %s1429, 8
          %s1431 = scalar_lea.vmem [#allocation11], %s1430
          %1432 = dma.done %s1428, 128
        $region88: #{tpu_custom_call.1} parent=83 // pred_fallthru
          _
        // Predicated region
        $region89: #{tpu_custom_call.1} parent=83 // pred_check
          %p1433 = pneg %p262
        $region90: #{tpu_custom_call.1} parent=83 // pred_check_branch
          %1435 = sbr.rel (%p1433) target = $region92
        $region91: #{tpu_custom_call.1} parent=83 // pred_region
          %s1436 = sand.u32 %s247, 1
          %s1437 = scalar_lea.sflag [#allocation13], %s1436
          %s1438 = sand.u32 %s247, 1
          %s1439 = smul.addr %s1438, 8
          %s1440 = scalar_lea.vmem [#allocation12], %s1439
          %1441 = dma.done %s1437, 128
        $region92: #{tpu_custom_call.1} parent=83 // pred_fallthru
          _
      $region84: #{tpu_custom_call.1} parent=5 // pred_fallthru
        _
    $region6: #{tpu_custom_call.1} parent=1 // loop_footer
      %s33 = sadd.s32 1, %s29
    $region7: #{tpu_custom_call.1} parent=1 // loop_footer_branch
      %28 = sbr.rel target = $region3
    $region8: #{tpu_custom_call.1} parent=1 // loop_exit
      _
    %1442 = vsyncpa [#allocation3], 1
    %s1443 = scalar_lea.sflag [#allocation3], 1
    %1444 = vsyncpa %s1443, 1
    %1445 = vsyncpa [#allocation6], 1
    %s1446 = scalar_lea.sflag [#allocation6], 1
    %1447 = vsyncpa %s1446, 1
    %1448 = vsyncpa [#allocation9], 1
    %1449 = vsyncpa [#allocation4], 1
    %s1450 = scalar_lea.sflag [#allocation4], 1
    %1451 = vsyncpa %s1450, 1
    %1452 = vsyncpa [#allocation13], 1
    %s1453 = scalar_lea.sflag [#allocation13], 1
    %1454 = vsyncpa %s1453, 1

</llo_original>
